<compile_context>
chip_gen: v5e
topology: v5e:2x2
jax: 0.10.0
libtpu: 0.0.40
codegen_flags: <defaults>
</compile_context>

<pallas_src>
import functools

import jax
import jax.numpy as jnp
import numpy as np
from jax.experimental import pallas as pl
from jax.experimental.pallas import tpu as pltpu


def _erf(x):
    # Abramowitz & Stegun 7.1.26 rational approximation, |err| < 1.5e-7.
    # The divide is routed to the otherwise-idle EUP via approx reciprocal.
    # TODO(synk): Mosaic has no native erf; this stands in for nn.GELU's exact erf.
    p = 0.3275911
    a1, a2, a3, a4, a5 = (0.254829592, -0.284496736, 1.421413741,
                          -1.453152027, 1.061405429)
    ax = jnp.abs(x)
    t = pl.reciprocal(1.0 + p * ax, approx=True)
    poly = ((((a5 * t + a4) * t + a3) * t + a2) * t + a1) * t
    e = 1.0 - poly * jnp.exp(-ax * ax)
    return jnp.where(x >= 0.0, e, -e)


def _fused_kernel(xs2d_ref, w1g_ref, b1_ref, w2k_ref, b2_ref,
                  cv2_ref, stats_ref, s_ref, *, H2, W2, C):
    """Per sample: cv1 + MaxPool -> concat -> pad -> cv2 + BN partial stats.

    xs2d_ref : (H2+1, W2+1, 4C)  space-to-depth of the zero-padded input
               channel block (2p+q) holds xpad[2i+p, 2j+q, :].
    s_ref    : (H2+2, W2+2, 3*C2) VMEM scratch, width-im2col of the padded
               concat([cv1, mp]) map: s[r, j, m*C2:(m+1)*C2] = ypad[r, j+m-1].
    """
    C2 = 2 * C
    HW = H2 * W2

    # ---- cv1 (3x3, stride 2, pad 1): 4 contiguous patches, K = 4*C matmuls ----
    acc1 = jnp.zeros((HW, C), jnp.float32)
    for g, (dh, dw) in enumerate(((0, 0), (0, 1), (1, 0), (1, 1))):
        patch = xs2d_ref[dh:dh + H2, dw:dw + W2, :]            # (H2, W2, 4C)
        acc1 = acc1 + jnp.dot(patch.reshape(HW, 4 * C), w1g_ref[g],
                              preferred_element_type=jnp.float32)
    acc1 = acc1 + b1_ref[...]                                  # (1, C) broadcast
    cv1 = acc1.reshape(H2, W2, C).astype(s_ref.dtype)

    # ---- MaxPool2d(2,2): elementwise max of the 4 parity planes (pure VPU) ----
    mp = jnp.maximum(
        jnp.maximum(xs2d_ref[0:H2, 0:W2, 3 * C:4 * C],         # x[2i  , 2j  ]
                    xs2d_ref[0:H2, 1:W2 + 1, 2 * C:3 * C]),    # x[2i  , 2j+1]
        jnp.maximum(xs2d_ref[1:H2 + 1, 0:W2, C:2 * C],         # x[2i+1, 2j  ]
                    xs2d_ref[1:H2 + 1, 1:W2 + 1, 0:C])         # x[2i+1, 2j+1]
    ).astype(s_ref.dtype)

    # ---- Build width-im2col scratch for cv2 entirely in VMEM -----------------
    # ypad = zero-pad(concat([cv1, mp], channel)); s[r, j, m] = ypad[r, j+m-1].
    # Only the border strips that the cv2 reads actually touch are zeroed each
    # step (the interior read region is fully rewritten below), instead of a
    # full-scratch zero fill.  Border elements that are never read are left
    # untouched.
    zero_row = jnp.zeros((1, W2 + 2, 3 * C2), s_ref.dtype)
    s_ref[0:1, :, :] = zero_row                                # top padding row
    s_ref[H2 + 1:H2 + 2, :, :] = zero_row                      # bottom padding row
    zero_col = jnp.zeros((H2, 1, C2), s_ref.dtype)
    s_ref[1:H2 + 1, 1:2, 0:C2] = zero_col                      # left pad, kw=0 block
    s_ref[1:H2 + 1, W2:W2 + 1, 2 * C2:3 * C2] = zero_col       # right pad, kw=2 block
    # m = 0 (kw = 0)
    s_ref[1:H2 + 1, 2:W2 + 2, 0:C] = cv1
    s_ref[1:H2 + 1, 2:W2 + 2, C:C2] = mp
    # m = 1 (kw = 1)
    s_ref[1:H2 + 1, 1:W2 + 1, C2:C2 + C] = cv1
    s_ref[1:H2 + 1, 1:W2 + 1, C2 + C:2 * C2] = mp
    # m = 2 (kw = 2)
    s_ref[1:H2 + 1, 0:W2, 2 * C2:2 * C2 + C] = cv1
    s_ref[1:H2 + 1, 0:W2, 2 * C2 + C:3 * C2] = mp

    # ---- cv2 (3x3, stride 1, pad 1): 3 matmuls with K = 3*C2 ------------------
    acc2 = jnp.zeros((HW, C2), jnp.float32)
    for kh in range(3):
        patch = s_ref[kh:kh + H2, 1:W2 + 1, :]                 # (H2, W2, 3*C2)
        acc2 = acc2 + jnp.dot(patch.reshape(HW, 3 * C2), w2k_ref[kh],
                              preferred_element_type=jnp.float32)
    acc2 = acc2 + b2_ref[...]                                  # (1, C2) broadcast
    cv2_ref[...] = acc2

    # ---- Per-sample BatchNorm partials (mean + centered sum of squares) -------
    mu = jnp.sum(acc2, axis=0, keepdims=True) * (1.0 / HW)     # (1, C2)
    d = acc2 - mu
    stats_ref[0:1, :] = mu
    stats_ref[1:2, :] = jnp.sum(d * d, axis=0, keepdims=True)


def _bn_gelu_kernel(y_ref, scale_ref, shift_ref, out_ref):
    """Folded BatchNorm affine + exact GELU (erf-based)."""
    z = y_ref[...] * scale_ref[...] + shift_ref[...]
    out_ref[...] = 0.5 * z * (1.0 + _erf(z * 0.7071067811865476))


@functools.partial(jax.jit, static_argnames=("compute_dtype",))
def transition_block(x_nchw, params, *, compute_dtype=jnp.float32):
    N, C, H, W = x_nchw.shape
    C2, H2, W2 = 2 * C, H // 2, W // 2
    HW = H2 * W2

    # NHWC + pad 1, then space-to-depth on the padded image so all in-kernel
    # loads are contiguous and the cv1 padding needs no further handling.
    # (XLA fuses the pad + transpose into one rearrangement copy.)
    x = jnp.transpose(x_nchw, (0, 2, 3, 1)).astype(jnp.float32)
    xpad = jnp.pad(x, ((0, 0), (1, 1), (1, 1), (0, 0)))
    xs2d = (xpad.reshape(N, H2 + 1, 2, W2 + 1, 2, C)
                .transpose(0, 1, 3, 2, 4, 5)
                .reshape(N, H2 + 1, W2 + 1, 4 * C)).astype(compute_dtype)

    # cv1 weights regrouped for space-to-depth: group g = 2*dh + dw gets a
    # (4C, C) slab whose channel block (2p + q) is w1[2dh+p, 2dw+q] (zero when
    # the tap falls outside the 3x3 kernel).
    w1 = params["w1"].astype(jnp.float32)
    w1g = jnp.zeros((4, 4 * C, C), jnp.float32)
    for dh in range(2):
        for dw in range(2):
            for p in range(2):
                for q in range(2):
                    kh, kw = 2 * dh + p, 2 * dw + q
                    if kh < 3 and kw < 3:
                        blk = 2 * p + q
                        w1g = w1g.at[2 * dh + dw,
                                     blk * C:(blk + 1) * C, :].set(w1[kh, kw])
    w1g = w1g.astype(compute_dtype)

    # cv2 weights stacked along kw: (3, 3*C2, C2), row-block m = w2[kh, m].
    w2k = params["w2"].astype(jnp.float32).reshape(3, 3 * C2, C2).astype(compute_dtype)
    b1 = params["b1"].astype(jnp.float32).reshape(1, C)
    b2 = params["b2"].astype(jnp.float32).reshape(1, C2)

    cparams = pltpu.CompilerParams(
        dimension_semantics=("parallel",),
        vmem_limit_bytes=48 * 1024 * 1024)

    # TODO(synk): for large H*W*C add a spatial (row-tile) grid axis with halo
    # handling so per-step blocks stay bounded on v7x's 64 MiB VMEM.
    cv2_out, stats = pl.pallas_call(
        functools.partial(_fused_kernel, H2=H2, W2=W2, C=C),
        grid=(N,),
        in_specs=[
            pl.BlockSpec((None, H2 + 1, W2 + 1, 4 * C), lambda b: (b, 0, 0, 0)),
            pl.BlockSpec((4, 4 * C, C), lambda b: (0, 0, 0)),
            pl.BlockSpec((1, C), lambda b: (0, 0)),
            pl.BlockSpec((3, 3 * C2, C2), lambda b: (0, 0, 0)),
            pl.BlockSpec((1, C2), lambda b: (0, 0)),
        ],
        out_specs=[
            pl.BlockSpec((None, HW, C2), lambda b: (b, 0, 0)),
            pl.BlockSpec((None, 2, C2), lambda b: (b, 0, 0)),
        ],
        out_shape=[
            jax.ShapeDtypeStruct((N, HW, C2), jnp.float32),
            jax.ShapeDtypeStruct((N, 2, C2), jnp.float32),
        ],
        scratch_shapes=[pltpu.VMEM((H2 + 2, W2 + 2, 3 * C2), compute_dtype)],
        compiler_params=cparams,
    )(xs2d, w1g, b1, w2k, b2)

    # BatchNorm2d (training mode): pooled mean / biased variance merged from the
    # per-sample partials (numerically stable vs. raw E[x^2] - E[x]^2).
    mean_i = stats[:, 0, :]                                    # (N, C2)
    m2_i = stats[:, 1, :]                                      # (N, C2)
    mean = jnp.mean(mean_i, axis=0)
    var = (jnp.sum(m2_i, axis=0)
           + HW * jnp.sum((mean_i - mean) ** 2, axis=0)) / (N * HW)
    inv_std = jax.lax.rsqrt(var + 1e-5)
    scale = (params["gamma"] * inv_std).reshape(1, C2)
    shift = (params["beta"] - params["gamma"] * mean * inv_std).reshape(1, C2)

    out = pl.pallas_call(
        _bn_gelu_kernel,
        grid=(N,),
        in_specs=[
            pl.BlockSpec((None, HW, C2), lambda b: (b, 0, 0)),
            pl.BlockSpec((1, C2), lambda b: (0, 0)),
            pl.BlockSpec((1, C2), lambda b: (0, 0)),
        ],
        out_specs=pl.BlockSpec((None, HW, C2), lambda b: (b, 0, 0)),
        out_shape=jax.ShapeDtypeStruct((N, HW, C2), jnp.float32),
        input_output_aliases={0: 0},   # overwrite the cv2 buffer in place
        compiler_params=cparams,
    )(cv2_out, scale, shift)

    # TODO(synk): for realistic shapes fold this NHWC->NCHW transpose into the
    # BN+GELU store (write (N, C2, H2*W2) blocks in-kernel) to save one HBM pass.
    return jnp.transpose(out.reshape(N, H2, W2, C2), (0, 3, 1, 2))


def init_params(key, c):
    """Deterministic synthetic parameters (conv weights in HWIO for NHWC kernels)."""
    c2 = 2 * c
    k1, k2, k3, k4 = jax.random.split(key, 4)
    return {
        "w1": 0.2 * jax.random.normal(k1, (3, 3, c, c), jnp.float32),
        "b1": 0.05 * jax.random.normal(k2, (c,), jnp.float32),
        "w2": 0.1 * jax.random.normal(k3, (3, 3, c2, c2), jnp.float32),
        "b2": 0.05 * jax.random.normal(k4, (c2,), jnp.float32),
        "gamma": jnp.ones((c2,), jnp.float32),   # BatchNorm2d default init
        "beta": jnp.zeros((c2,), jnp.float32),
    }


def reference(x_nchw, params):
    """Pure-JAX reference mirroring the PyTorch forward (training-mode BN, exact GELU)."""
    N, C, H, W = x_nchw.shape
    x = jnp.transpose(x_nchw, (0, 2, 3, 1)).astype(jnp.float32)
    mp = x.reshape(N, H // 2, 2, W // 2, 2, C).max(axis=(2, 4))
    cv1 = jax.lax.conv_general_dilated(
        x, params["w1"], (2, 2), ((1, 1), (1, 1)),
        dimension_numbers=("NHWC", "HWIO", "NHWC")) + params["b1"]
    x3 = jnp.concatenate([cv1, mp], axis=-1)
    cv2 = jax.lax.conv_general_dilated(
        x3, params["w2"], (1, 1), ((1, 1), (1, 1)),
        dimension_numbers=("NHWC", "HWIO", "NHWC")) + params["b2"]
    mean = cv2.mean(axis=(0, 1, 2))
    var = cv2.var(axis=(0, 1, 2))
    y = (cv2 - mean) * jax.lax.rsqrt(var + 1e-5) * params["gamma"] + params["beta"]
    y = jax.nn.gelu(y, approximate=False)
    return jnp.transpose(y, (0, 3, 1, 2))


if __name__ == "__main__":
    key = jax.random.PRNGKey(0)
    kx, kp = jax.random.split(key)
    N, C, H, W = 2, 4, 16, 16
    x = jax.random.normal(kx, (N, C, H, W), jnp.float32)
    params = init_params(kp, C)

    out = jax.block_until_ready(transition_block(x, params))
    ref = jax.block_until_ready(reference(x, params))

    assert out.shape == (N, 2 * C, H // 2, W // 2), out.shape
    np.testing.assert_allclose(np.asarray(out), np.asarray(ref), rtol=2e-3, atol=2e-3)
    print("KERNEL_OK")
</pallas_src>

<mosaic_0001>
module attributes {stable_mosaic.version = 11 : i64} {
  func.func @_fused_kernel(%arg0: i32, %arg1: memref<1x9x9x16xf32, #tpu.memory_space<vmem>>, %arg2: memref<4x16x4xf32, #tpu.memory_space<vmem>>, %arg3: memref<1x4xf32, #tpu.memory_space<vmem>>, %arg4: memref<3x24x8xf32, #tpu.memory_space<vmem>>, %arg5: memref<1x8xf32, #tpu.memory_space<vmem>>, %arg6: memref<1x64x8xf32, #tpu.memory_space<vmem>>, %arg7: memref<1x2x8xf32, #tpu.memory_space<vmem>>, %arg8: memref<10x10x24xf32, #tpu.memory_space<vmem>>) attributes {dimension_semantics = [#tpu.dimension_semantics<parallel>], iteration_bounds = array<i64: 2>, scalar_prefetch = 0 : i64, scratch_operands = 1 : i64, tpu.core_type = #tpu.core_type<tc>, window_params = [{transform_indices = @transform_0, window_bounds = array<i64: 1, 9, 9, 16>}, {pipeline_mode = #tpu.pipeline_mode<synchronous>, transform_indices = @transform_1, window_bounds = array<i64: 4, 16, 4>}, {pipeline_mode = #tpu.pipeline_mode<synchronous>, transform_indices = @transform_2, window_bounds = array<i64: 1, 4>}, {pipeline_mode = #tpu.pipeline_mode<synchronous>, transform_indices = @transform_3, window_bounds = array<i64: 3, 24, 8>}, {pipeline_mode = #tpu.pipeline_mode<synchronous>, transform_indices = @transform_4, window_bounds = array<i64: 1, 8>}, {transform_indices = @transform_5, window_bounds = array<i64: 1, 64, 8>}, {transform_indices = @transform_6, window_bounds = array<i64: 1, 2, 8>}]} {
    %cst = arith.constant 0.000000e+00 : f32
    %0 = vector.broadcast %cst : f32 to vector<64x4xf32>
    %c0 = arith.constant 0 : index
    %c0_0 = arith.constant 0 : index
    %c0_1 = arith.constant 0 : index
    %c0_2 = arith.constant 0 : index
    %1 = vector.load %arg1[%c0, %c0_0, %c0_1, %c0_2] : memref<1x9x9x16xf32, #tpu.memory_space<vmem>>, vector<1x8x8x16xf32>
    %2 = vector.shape_cast %1 : vector<1x8x8x16xf32> to vector<8x8x16xf32>
    %3 = vector.shape_cast %2 : vector<8x8x16xf32> to vector<64x16xf32>
    %c0_3 = arith.constant 0 : index
    %c0_4 = arith.constant 0 : index
    %c0_5 = arith.constant 0 : index
    %4 = vector.load %arg2[%c0_3, %c0_4, %c0_5] : memref<4x16x4xf32, #tpu.memory_space<vmem>>, vector<1x16x4xf32>
    %5 = vector.shape_cast %4 : vector<1x16x4xf32> to vector<16x4xf32>
    %cst_6 = arith.constant dense<0.000000e+00> : vector<64x4xf32>
    %6 = tpu.matmul %3, %5, %cst_6 {dimension_numbers = #tpu.dot_dimension_numbers<[1], [0], [0], [1], [0, 0, 1, 1], [], []>} : vector<64x16xf32>, vector<16x4xf32>, vector<64x4xf32> -> vector<64x4xf32>
    %7 = arith.addf %0, %6 : vector<64x4xf32>
    %c0_7 = arith.constant 0 : index
    %c0_8 = arith.constant 0 : index
    %c1 = arith.constant 1 : index
    %c0_9 = arith.constant 0 : index
    %8 = vector.load %arg1[%c0_7, %c0_8, %c1, %c0_9] : memref<1x9x9x16xf32, #tpu.memory_space<vmem>>, vector<1x8x8x16xf32>
    %9 = vector.shape_cast %8 : vector<1x8x8x16xf32> to vector<8x8x16xf32>
    %10 = vector.shape_cast %9 : vector<8x8x16xf32> to vector<64x16xf32>
    %c1_10 = arith.constant 1 : index
    %c0_11 = arith.constant 0 : index
    %c0_12 = arith.constant 0 : index
    %11 = vector.load %arg2[%c1_10, %c0_11, %c0_12] : memref<4x16x4xf32, #tpu.memory_space<vmem>>, vector<1x16x4xf32>
    %12 = vector.shape_cast %11 : vector<1x16x4xf32> to vector<16x4xf32>
    %cst_13 = arith.constant dense<0.000000e+00> : vector<64x4xf32>
    %13 = tpu.matmul %10, %12, %cst_13 {dimension_numbers = #tpu.dot_dimension_numbers<[1], [0], [0], [1], [0, 0, 1, 1], [], []>} : vector<64x16xf32>, vector<16x4xf32>, vector<64x4xf32> -> vector<64x4xf32>
    %14 = arith.addf %7, %13 : vector<64x4xf32>
    %c0_14 = arith.constant 0 : index
    %c1_15 = arith.constant 1 : index
    %c0_16 = arith.constant 0 : index
    %c0_17 = arith.constant 0 : index
    %15 = vector.load %arg1[%c0_14, %c1_15, %c0_16, %c0_17] : memref<1x9x9x16xf32, #tpu.memory_space<vmem>>, vector<1x8x8x16xf32>
    %16 = vector.shape_cast %15 : vector<1x8x8x16xf32> to vector<8x8x16xf32>
    %17 = vector.shape_cast %16 : vector<8x8x16xf32> to vector<64x16xf32>
    %c2 = arith.constant 2 : index
    %c0_18 = arith.constant 0 : index
    %c0_19 = arith.constant 0 : index
    %18 = vector.load %arg2[%c2, %c0_18, %c0_19] : memref<4x16x4xf32, #tpu.memory_space<vmem>>, vector<1x16x4xf32>
    %19 = vector.shape_cast %18 : vector<1x16x4xf32> to vector<16x4xf32>
    %cst_20 = arith.constant dense<0.000000e+00> : vector<64x4xf32>
    %20 = tpu.matmul %17, %19, %cst_20 {dimension_numbers = #tpu.dot_dimension_numbers<[1], [0], [0], [1], [0, 0, 1, 1], [], []>} : vector<64x16xf32>, vector<16x4xf32>, vector<64x4xf32> -> vector<64x4xf32>
    %21 = arith.addf %14, %20 : vector<64x4xf32>
    %c0_21 = arith.constant 0 : index
    %c1_22 = arith.constant 1 : index
    %c1_23 = arith.constant 1 : index
    %c0_24 = arith.constant 0 : index
    %22 = vector.load %arg1[%c0_21, %c1_22, %c1_23, %c0_24] : memref<1x9x9x16xf32, #tpu.memory_space<vmem>>, vector<1x8x8x16xf32>
    %23 = vector.shape_cast %22 : vector<1x8x8x16xf32> to vector<8x8x16xf32>
    %24 = vector.shape_cast %23 : vector<8x8x16xf32> to vector<64x16xf32>
    %c3 = arith.constant 3 : index
    %c0_25 = arith.constant 0 : index
    %c0_26 = arith.constant 0 : index
    %25 = vector.load %arg2[%c3, %c0_25, %c0_26] : memref<4x16x4xf32, #tpu.memory_space<vmem>>, vector<1x16x4xf32>
    %26 = vector.shape_cast %25 : vector<1x16x4xf32> to vector<16x4xf32>
    %cst_27 = arith.constant dense<0.000000e+00> : vector<64x4xf32>
    %27 = tpu.matmul %24, %26, %cst_27 {dimension_numbers = #tpu.dot_dimension_numbers<[1], [0], [0], [1], [0, 0, 1, 1], [], []>} : vector<64x16xf32>, vector<16x4xf32>, vector<64x4xf32> -> vector<64x4xf32>
    %28 = arith.addf %21, %27 : vector<64x4xf32>
    %c0_28 = arith.constant 0 : index
    %c0_29 = arith.constant 0 : index
    %29 = vector.load %arg3[%c0_28, %c0_29] : memref<1x4xf32, #tpu.memory_space<vmem>>, vector<1x4xf32>
    %30 = vector.broadcast %29 : vector<1x4xf32> to vector<64x4xf32>
    %31 = arith.addf %28, %30 : vector<64x4xf32>
    %32 = vector.shape_cast %31 : vector<64x4xf32> to vector<8x8x4xf32>
    %c0_30 = arith.constant 0 : index
    %c0_31 = arith.constant 0 : index
    %c0_32 = arith.constant 0 : index
    %c12 = arith.constant 12 : index
    %33 = vector.load %arg1[%c0_30, %c0_31, %c0_32, %c12] : memref<1x9x9x16xf32, #tpu.memory_space<vmem>>, vector<1x8x8x4xf32>
    %34 = vector.shape_cast %33 : vector<1x8x8x4xf32> to vector<8x8x4xf32>
    %c0_33 = arith.constant 0 : index
    %c0_34 = arith.constant 0 : index
    %c1_35 = arith.constant 1 : index
    %c8 = arith.constant 8 : index
    %35 = vector.load %arg1[%c0_33, %c0_34, %c1_35, %c8] : memref<1x9x9x16xf32, #tpu.memory_space<vmem>>, vector<1x8x8x4xf32>
    %36 = vector.shape_cast %35 : vector<1x8x8x4xf32> to vector<8x8x4xf32>
    %37 = arith.maximumf %34, %36 : vector<8x8x4xf32>
    %c0_36 = arith.constant 0 : index
    %c1_37 = arith.constant 1 : index
    %c0_38 = arith.constant 0 : index
    %c4 = arith.constant 4 : index
    %38 = vector.load %arg1[%c0_36, %c1_37, %c0_38, %c4] : memref<1x9x9x16xf32, #tpu.memory_space<vmem>>, vector<1x8x8x4xf32>
    %39 = vector.shape_cast %38 : vector<1x8x8x4xf32> to vector<8x8x4xf32>
    %c0_39 = arith.constant 0 : index
    %c1_40 = arith.constant 1 : index
    %c1_41 = arith.constant 1 : index
    %c0_42 = arith.constant 0 : index
    %40 = vector.load %arg1[%c0_39, %c1_40, %c1_41, %c0_42] : memref<1x9x9x16xf32, #tpu.memory_space<vmem>>, vector<1x8x8x4xf32>
    %41 = vector.shape_cast %40 : vector<1x8x8x4xf32> to vector<8x8x4xf32>
    %42 = arith.maximumf %39, %41 : vector<8x8x4xf32>
    %43 = arith.maximumf %37, %42 : vector<8x8x4xf32>
    %cst_43 = arith.constant 0.000000e+00 : f32
    %44 = vector.broadcast %cst_43 : f32 to vector<1x10x24xf32>
    %c0_44 = arith.constant 0 : index
    %c0_45 = arith.constant 0 : index
    %c0_46 = arith.constant 0 : index
    %45 = vector.load %arg8[%c0_44, %c0_45, %c0_46] : memref<10x10x24xf32, #tpu.memory_space<vmem>>, vector<1x10x24xf32>
    tpu.vector_store %arg8[%c0_44, %c0_45, %c0_46], %44 {strides = array<i32>} : memref<10x10x24xf32, #tpu.memory_space<vmem>>, vector<1x10x24xf32>,
    %c9 = arith.constant 9 : index
    %c0_47 = arith.constant 0 : index
    %c0_48 = arith.constant 0 : index
    %46 = vector.load %arg8[%c9, %c0_47, %c0_48] : memref<10x10x24xf32, #tpu.memory_space<vmem>>, vector<1x10x24xf32>
    tpu.vector_store %arg8[%c9, %c0_47, %c0_48], %44 {strides = array<i32>} : memref<10x10x24xf32, #tpu.memory_space<vmem>>, vector<1x10x24xf32>,
    %cst_49 = arith.constant 0.000000e+00 : f32
    %47 = vector.broadcast %cst_49 : f32 to vector<8x1x8xf32>
    %c1_50 = arith.constant 1 : index
    %c1_51 = arith.constant 1 : index
    %c0_52 = arith.constant 0 : index
    %48 = vector.load %arg8[%c1_50, %c1_51, %c0_52] : memref<10x10x24xf32, #tpu.memory_space<vmem>>, vector<8x1x8xf32>
    tpu.vector_store %arg8[%c1_50, %c1_51, %c0_52], %47 {strides = array<i32>} : memref<10x10x24xf32, #tpu.memory_space<vmem>>, vector<8x1x8xf32>,
    %c1_53 = arith.constant 1 : index
    %c8_54 = arith.constant 8 : index
    %c16 = arith.constant 16 : index
    %49 = vector.load %arg8[%c1_53, %c8_54, %c16] : memref<10x10x24xf32, #tpu.memory_space<vmem>>, vector<8x1x8xf32>
    tpu.vector_store %arg8[%c1_53, %c8_54, %c16], %47 {strides = array<i32>} : memref<10x10x24xf32, #tpu.memory_space<vmem>>, vector<8x1x8xf32>,
    %c1_55 = arith.constant 1 : index
    %c2_56 = arith.constant 2 : index
    %c0_57 = arith.constant 0 : index
    %50 = vector.load %arg8[%c1_55, %c2_56, %c0_57] : memref<10x10x24xf32, #tpu.memory_space<vmem>>, vector<8x8x4xf32>
    tpu.vector_store %arg8[%c1_55, %c2_56, %c0_57], %32 {strides = array<i32>} : memref<10x10x24xf32, #tpu.memory_space<vmem>>, vector<8x8x4xf32>,
    %c1_58 = arith.constant 1 : index
    %c2_59 = arith.constant 2 : index
    %c4_60 = arith.constant 4 : index
    %51 = vector.load %arg8[%c1_58, %c2_59, %c4_60] : memref<10x10x24xf32, #tpu.memory_space<vmem>>, vector<8x8x4xf32>
    tpu.vector_store %arg8[%c1_58, %c2_59, %c4_60], %43 {strides = array<i32>} : memref<10x10x24xf32, #tpu.memory_space<vmem>>, vector<8x8x4xf32>,
    %c1_61 = arith.constant 1 : index
    %c1_62 = arith.constant 1 : index
    %c8_63 = arith.constant 8 : index
    %52 = vector.load %arg8[%c1_61, %c1_62, %c8_63] : memref<10x10x24xf32, #tpu.memory_space<vmem>>, vector<8x8x4xf32>
    tpu.vector_store %arg8[%c1_61, %c1_62, %c8_63], %32 {strides = array<i32>} : memref<10x10x24xf32, #tpu.memory_space<vmem>>, vector<8x8x4xf32>,
    %c1_64 = arith.constant 1 : index
    %c1_65 = arith.constant 1 : index
    %c12_66 = arith.constant 12 : index
    %53 = vector.load %arg8[%c1_64, %c1_65, %c12_66] : memref<10x10x24xf32, #tpu.memory_space<vmem>>, vector<8x8x4xf32>
    tpu.vector_store %arg8[%c1_64, %c1_65, %c12_66], %43 {strides = array<i32>} : memref<10x10x24xf32, #tpu.memory_space<vmem>>, vector<8x8x4xf32>,
    %c1_67 = arith.constant 1 : index
    %c0_68 = arith.constant 0 : index
    %c16_69 = arith.constant 16 : index
    %54 = vector.load %arg8[%c1_67, %c0_68, %c16_69] : memref<10x10x24xf32, #tpu.memory_space<vmem>>, vector<8x8x4xf32>
    tpu.vector_store %arg8[%c1_67, %c0_68, %c16_69], %32 {strides = array<i32>} : memref<10x10x24xf32, #tpu.memory_space<vmem>>, vector<8x8x4xf32>,
    %c1_70 = arith.constant 1 : index
    %c0_71 = arith.constant 0 : index
    %c20 = arith.constant 20 : index
    %55 = vector.load %arg8[%c1_70, %c0_71, %c20] : memref<10x10x24xf32, #tpu.memory_space<vmem>>, vector<8x8x4xf32>
    tpu.vector_store %arg8[%c1_70, %c0_71, %c20], %43 {strides = array<i32>} : memref<10x10x24xf32, #tpu.memory_space<vmem>>, vector<8x8x4xf32>,
    %cst_72 = arith.constant 0.000000e+00 : f32
    %56 = vector.broadcast %cst_72 : f32 to vector<64x8xf32>
    %c0_73 = arith.constant 0 : index
    %c1_74 = arith.constant 1 : index
    %c0_75 = arith.constant 0 : index
    %57 = vector.load %arg8[%c0_73, %c1_74, %c0_75] : memref<10x10x24xf32, #tpu.memory_space<vmem>>, vector<8x8x24xf32>
    %58 = vector.shape_cast %57 : vector<8x8x24xf32> to vector<64x24xf32>
    %c0_76 = arith.constant 0 : index
    %c0_77 = arith.constant 0 : index
    %c0_78 = arith.constant 0 : index
    %59 = vector.load %arg4[%c0_76, %c0_77, %c0_78] : memref<3x24x8xf32, #tpu.memory_space<vmem>>, vector<1x24x8xf32>
    %60 = vector.shape_cast %59 : vector<1x24x8xf32> to vector<24x8xf32>
    %cst_79 = arith.constant dense<0.000000e+00> : vector<64x8xf32>
    %61 = tpu.matmul %58, %60, %cst_79 {dimension_numbers = #tpu.dot_dimension_numbers<[1], [0], [0], [1], [0, 0, 1, 1], [], []>} : vector<64x24xf32>, vector<24x8xf32>, vector<64x8xf32> -> vector<64x8xf32>
    %62 = arith.addf %56, %61 : vector<64x8xf32>
    %c1_80 = arith.constant 1 : index
    %c1_81 = arith.constant 1 : index
    %c0_82 = arith.constant 0 : index
    %63 = vector.load %arg8[%c1_80, %c1_81, %c0_82] : memref<10x10x24xf32, #tpu.memory_space<vmem>>, vector<8x8x24xf32>
    %64 = vector.shape_cast %63 : vector<8x8x24xf32> to vector<64x24xf32>
    %c1_83 = arith.constant 1 : index
    %c0_84 = arith.constant 0 : index
    %c0_85 = arith.constant 0 : index
    %65 = vector.load %arg4[%c1_83, %c0_84, %c0_85] : memref<3x24x8xf32, #tpu.memory_space<vmem>>, vector<1x24x8xf32>
    %66 = vector.shape_cast %65 : vector<1x24x8xf32> to vector<24x8xf32>
    %cst_86 = arith.constant dense<0.000000e+00> : vector<64x8xf32>
    %67 = tpu.matmul %64, %66, %cst_86 {dimension_numbers = #tpu.dot_dimension_numbers<[1], [0], [0], [1], [0, 0, 1, 1], [], []>} : vector<64x24xf32>, vector<24x8xf32>, vector<64x8xf32> -> vector<64x8xf32>
    %68 = arith.addf %62, %67 : vector<64x8xf32>
    %c2_87 = arith.constant 2 : index
    %c1_88 = arith.constant 1 : index
    %c0_89 = arith.constant 0 : index
    %69 = vector.load %arg8[%c2_87, %c1_88, %c0_89] : memref<10x10x24xf32, #tpu.memory_space<vmem>>, vector<8x8x24xf32>
    %70 = vector.shape_cast %69 : vector<8x8x24xf32> to vector<64x24xf32>
    %c2_90 = arith.constant 2 : index
    %c0_91 = arith.constant 0 : index
    %c0_92 = arith.constant 0 : index
    %71 = vector.load %arg4[%c2_90, %c0_91, %c0_92] : memref<3x24x8xf32, #tpu.memory_space<vmem>>, vector<1x24x8xf32>
    %72 = vector.shape_cast %71 : vector<1x24x8xf32> to vector<24x8xf32>
    %cst_93 = arith.constant dense<0.000000e+00> : vector<64x8xf32>
    %73 = tpu.matmul %70, %72, %cst_93 {dimension_numbers = #tpu.dot_dimension_numbers<[1], [0], [0], [1], [0, 0, 1, 1], [], []>} : vector<64x24xf32>, vector<24x8xf32>, vector<64x8xf32> -> vector<64x8xf32>
    %74 = arith.addf %68, %73 : vector<64x8xf32>
    %c0_94 = arith.constant 0 : index
    %c0_95 = arith.constant 0 : index
    %75 = vector.load %arg5[%c0_94, %c0_95] : memref<1x8xf32, #tpu.memory_space<vmem>>, vector<1x8xf32>
    %76 = vector.broadcast %75 : vector<1x8xf32> to vector<64x8xf32>
    %77 = arith.addf %74, %76 : vector<64x8xf32>
    %c0_96 = arith.constant 0 : index
    %c0_97 = arith.constant 0 : index
    %c0_98 = arith.constant 0 : index
    %78 = vector.load %arg6[%c0_96, %c0_97, %c0_98] : memref<1x64x8xf32, #tpu.memory_space<vmem>>, vector<1x64x8xf32>
    %79 = vector.shape_cast %78 : vector<1x64x8xf32> to vector<64x8xf32>
    %80 = vector.shape_cast %77 : vector<64x8xf32> to vector<1x64x8xf32>
    tpu.vector_store %arg6[%c0_96, %c0_97, %c0_98], %80 {strides = array<i32>} : memref<1x64x8xf32, #tpu.memory_space<vmem>>, vector<1x64x8xf32>,
    %cst_99 = arith.constant dense<0.000000e+00> : vector<8xf32>
    %81 = vector.multi_reduction <add>, %77, %cst_99 [0] : vector<64x8xf32> to vector<8xf32>
    %82 = vector.shape_cast %81 : vector<8xf32> to vector<1x8xf32>
    %cst_100 = arith.constant 1.562500e-02 : f32
    %83 = vector.broadcast %cst_100 : f32 to vector<1x8xf32>
    %84 = arith.mulf %82, %83 : vector<1x8xf32>
    %85 = vector.broadcast %84 : vector<1x8xf32> to vector<64x8xf32>
    %86 = arith.subf %77, %85 : vector<64x8xf32>
    %c0_101 = arith.constant 0 : index
    %c0_102 = arith.constant 0 : index
    %c0_103 = arith.constant 0 : index
    %87 = vector.load %arg7[%c0_101, %c0_102, %c0_103] : memref<1x2x8xf32, #tpu.memory_space<vmem>>, vector<1x1x8xf32>
    %88 = vector.shape_cast %87 : vector<1x1x8xf32> to vector<1x8xf32>
    %89 = vector.shape_cast %84 : vector<1x8xf32> to vector<1x1x8xf32>
    tpu.vector_store %arg7[%c0_101, %c0_102, %c0_103], %89 {strides = array<i32>} : memref<1x2x8xf32, #tpu.memory_space<vmem>>, vector<1x1x8xf32>,
    %90 = arith.mulf %86, %86 : vector<64x8xf32>
    %cst_104 = arith.constant dense<0.000000e+00> : vector<8xf32>
    %91 = vector.multi_reduction <add>, %90, %cst_104 [0] : vector<64x8xf32> to vector<8xf32>
    %92 = vector.shape_cast %91 : vector<8xf32> to vector<1x8xf32>
    %c0_105 = arith.constant 0 : index
    %c1_106 = arith.constant 1 : index
    %c0_107 = arith.constant 0 : index
    %93 = vector.load %arg7[%c0_105, %c1_106, %c0_107] : memref<1x2x8xf32, #tpu.memory_space<vmem>>, vector<1x1x8xf32>
    %94 = vector.shape_cast %93 : vector<1x1x8xf32> to vector<1x8xf32>
    %95 = vector.shape_cast %92 : vector<1x8xf32> to vector<1x1x8xf32>
    tpu.vector_store %arg7[%c0_105, %c1_106, %c0_107], %95 {strides = array<i32>} : memref<1x2x8xf32, #tpu.memory_space<vmem>>, vector<1x1x8xf32>,
    return
  }
  func.func @transform_0(%arg0: i32) -> (i32, i32, i32, i32) {
    %c0_i32 = arith.constant 0 : i32
    %c0_i32_0 = arith.constant 0 : i32
    %c0_i32_1 = arith.constant 0 : i32
    %c0_i32_2 = arith.constant 0 : i32
    return %arg0, %c0_i32, %c0_i32_0, %c0_i32_1 : i32, i32, i32, i32
  }
  func.func @transform_1(%arg0: i32) -> (i32, i32, i32) {
    %c0_i32 = arith.constant 0 : i32
    %c0_i32_0 = arith.constant 0 : i32
    %c0_i32_1 = arith.constant 0 : i32
    %c0_i32_2 = arith.constant 0 : i32
    return %c0_i32, %c0_i32_0, %c0_i32_1 : i32, i32, i32
  }
  func.func @transform_2(%arg0: i32) -> (i32, i32) {
    %c0_i32 = arith.constant 0 : i32
    %c0_i32_0 = arith.constant 0 : i32
    %c0_i32_1 = arith.constant 0 : i32
    return %c0_i32, %c0_i32_0 : i32, i32
  }
  func.func @transform_3(%arg0: i32) -> (i32, i32, i32) {
    %c0_i32 = arith.constant 0 : i32
    %c0_i32_0 = arith.constant 0 : i32
    %c0_i32_1 = arith.constant 0 : i32
    %c0_i32_2 = arith.constant 0 : i32
    return %c0_i32, %c0_i32_0, %c0_i32_1 : i32, i32, i32
  }
  func.func @transform_4(%arg0: i32) -> (i32, i32) {
    %c0_i32 = arith.constant 0 : i32
    %c0_i32_0 = arith.constant 0 : i32
    %c0_i32_1 = arith.constant 0 : i32
    return %c0_i32, %c0_i32_0 : i32, i32
  }
  func.func @transform_5(%arg0: i32) -> (i32, i32, i32) {
    %c0_i32 = arith.constant 0 : i32
    %c0_i32_0 = arith.constant 0 : i32
    %c0_i32_1 = arith.constant 0 : i32
    return %arg0, %c0_i32, %c0_i32_0 : i32, i32, i32
  }
  func.func @transform_6(%arg0: i32) -> (i32, i32, i32) {
    %c0_i32 = arith.constant 0 : i32
    %c0_i32_0 = arith.constant 0 : i32
    %c0_i32_1 = arith.constant 0 : i32
    return %arg0, %c0_i32, %c0_i32_0 : i32, i32, i32
  }
}

module attributes {stable_mosaic.version = 11 : i64} {
  func.func @_bn_gelu_kernel(%arg0: i32, %arg1: memref<1x64x8xf32, #tpu.memory_space<vmem>>, %arg2: memref<1x8xf32, #tpu.memory_space<vmem>>, %arg3: memref<1x8xf32, #tpu.memory_space<vmem>>, %arg4: memref<1x64x8xf32, #tpu.memory_space<vmem>>) attributes {dimension_semantics = [#tpu.dimension_semantics<parallel>], iteration_bounds = array<i64: 2>, scalar_prefetch = 0 : i64, scratch_operands = 0 : i64, tpu.core_type = #tpu.core_type<tc>, window_params = [{transform_indices = @transform_0, window_bounds = array<i64: 1, 64, 8>}, {pipeline_mode = #tpu.pipeline_mode<synchronous>, transform_indices = @transform_1, window_bounds = array<i64: 1, 8>}, {pipeline_mode = #tpu.pipeline_mode<synchronous>, transform_indices = @transform_2, window_bounds = array<i64: 1, 8>}, {transform_indices = @transform_3, window_bounds = array<i64: 1, 64, 8>}]} {
    %c0 = arith.constant 0 : index
    %c0_0 = arith.constant 0 : index
    %c0_1 = arith.constant 0 : index
    %0 = vector.load %arg1[%c0, %c0_0, %c0_1] : memref<1x64x8xf32, #tpu.memory_space<vmem>>, vector<1x64x8xf32>
    %1 = vector.shape_cast %0 : vector<1x64x8xf32> to vector<64x8xf32>
    %c0_2 = arith.constant 0 : index
    %c0_3 = arith.constant 0 : index
    %2 = vector.load %arg2[%c0_2, %c0_3] : memref<1x8xf32, #tpu.memory_space<vmem>>, vector<1x8xf32>
    %3 = vector.broadcast %2 : vector<1x8xf32> to vector<64x8xf32>
    %4 = arith.mulf %1, %3 : vector<64x8xf32>
    %c0_4 = arith.constant 0 : index
    %c0_5 = arith.constant 0 : index
    %5 = vector.load %arg3[%c0_4, %c0_5] : memref<1x8xf32, #tpu.memory_space<vmem>>, vector<1x8xf32>
    %6 = vector.broadcast %5 : vector<1x8xf32> to vector<64x8xf32>
    %7 = arith.addf %4, %6 : vector<64x8xf32>
    %cst = arith.constant 5.000000e-01 : f32
    %8 = vector.broadcast %cst : f32 to vector<64x8xf32>
    %9 = arith.mulf %8, %7 : vector<64x8xf32>
    %cst_6 = arith.constant 0.707106769 : f32
    %10 = vector.broadcast %cst_6 : f32 to vector<64x8xf32>
    %11 = arith.mulf %7, %10 : vector<64x8xf32>
    %12 = math.absf %11 : vector<64x8xf32>
    %cst_7 = arith.constant 0.327591091 : f32
    %13 = vector.broadcast %cst_7 : f32 to vector<64x8xf32>
    %14 = arith.mulf %13, %12 : vector<64x8xf32>
    %cst_8 = arith.constant 1.000000e+00 : f32
    %15 = vector.broadcast %cst_8 : f32 to vector<64x8xf32>
    %16 = arith.addf %15, %14 : vector<64x8xf32>
    %17 = tpu.reciprocal %16 {approx = true} : vector<64x8xf32> -> vector<64x8xf32>
    %cst_9 = arith.constant 1.06140542 : f32
    %18 = vector.broadcast %cst_9 : f32 to vector<64x8xf32>
    %19 = arith.mulf %18, %17 : vector<64x8xf32>
    %cst_10 = arith.constant -1.45315206 : f32
    %20 = vector.broadcast %cst_10 : f32 to vector<64x8xf32>
    %21 = arith.addf %19, %20 : vector<64x8xf32>
    %22 = arith.mulf %21, %17 : vector<64x8xf32>
    %cst_11 = arith.constant 1.42141378 : f32
    %23 = vector.broadcast %cst_11 : f32 to vector<64x8xf32>
    %24 = arith.addf %22, %23 : vector<64x8xf32>
    %25 = arith.mulf %24, %17 : vector<64x8xf32>
    %cst_12 = arith.constant -0.284496725 : f32
    %26 = vector.broadcast %cst_12 : f32 to vector<64x8xf32>
    %27 = arith.addf %25, %26 : vector<64x8xf32>
    %28 = arith.mulf %27, %17 : vector<64x8xf32>
    %cst_13 = arith.constant 0.254829586 : f32
    %29 = vector.broadcast %cst_13 : f32 to vector<64x8xf32>
    %30 = arith.addf %28, %29 : vector<64x8xf32>
    %31 = arith.mulf %30, %17 : vector<64x8xf32>
    %cst_14 = arith.constant 0.000000e+00 : f32
    %32 = vector.broadcast %cst_14 : f32 to vector<64x8xf32>
    %33 = arith.subf %32, %12 : vector<64x8xf32>
    %34 = arith.mulf %33, %12 : vector<64x8xf32>
    %35 = math.exp %34 : vector<64x8xf32>
    %36 = arith.mulf %31, %35 : vector<64x8xf32>
    %cst_15 = arith.constant 1.000000e+00 : f32
    %37 = vector.broadcast %cst_15 : f32 to vector<64x8xf32>
    %38 = arith.subf %37, %36 : vector<64x8xf32>
    %cst_16 = arith.constant 0.000000e+00 : f32
    %39 = vector.broadcast %cst_16 : f32 to vector<64x8xf32>
    %40 = arith.cmpf oge, %11, %39 : vector<64x8xf32>
    %cst_17 = arith.constant 0.000000e+00 : f32
    %41 = vector.broadcast %cst_17 : f32 to vector<64x8xf32>
    %42 = arith.subf %41, %38 : vector<64x8xf32>
    %43 = arith.select %40, %38, %42 : vector<64x8xi1>, vector<64x8xf32>
    %cst_18 = arith.constant 1.000000e+00 : f32
    %44 = vector.broadcast %cst_18 : f32 to vector<64x8xf32>
    %45 = arith.addf %44, %43 : vector<64x8xf32>
    %46 = arith.mulf %9, %45 : vector<64x8xf32>
    %c0_19 = arith.constant 0 : index
    %c0_20 = arith.constant 0 : index
    %c0_21 = arith.constant 0 : index
    %47 = vector.load %arg4[%c0_19, %c0_20, %c0_21] : memref<1x64x8xf32, #tpu.memory_space<vmem>>, vector<1x64x8xf32>
    %48 = vector.shape_cast %47 : vector<1x64x8xf32> to vector<64x8xf32>
    %49 = vector.shape_cast %46 : vector<64x8xf32> to vector<1x64x8xf32>
    tpu.vector_store %arg4[%c0_19, %c0_20, %c0_21], %49 {strides = array<i32>} : memref<1x64x8xf32, #tpu.memory_space<vmem>>, vector<1x64x8xf32>,
    return
  }
  func.func @transform_0(%arg0: i32) -> (i32, i32, i32) {
    %c0_i32 = arith.constant 0 : i32
    %c0_i32_0 = arith.constant 0 : i32
    %c0_i32_1 = arith.constant 0 : i32
    return %arg0, %c0_i32, %c0_i32_0 : i32, i32, i32
  }
  func.func @transform_1(%arg0: i32) -> (i32, i32) {
    %c0_i32 = arith.constant 0 : i32
    %c0_i32_0 = arith.constant 0 : i32
    %c0_i32_1 = arith.constant 0 : i32
    return %c0_i32, %c0_i32_0 : i32, i32
  }
  func.func @transform_2(%arg0: i32) -> (i32, i32) {
    %c0_i32 = arith.constant 0 : i32
    %c0_i32_0 = arith.constant 0 : i32
    %c0_i32_1 = arith.constant 0 : i32
    return %c0_i32, %c0_i32_0 : i32, i32
  }
  func.func @transform_3(%arg0: i32) -> (i32, i32, i32) {
    %c0_i32 = arith.constant 0 : i32
    %c0_i32_0 = arith.constant 0 : i32
    %c0_i32_1 = arith.constant 0 : i32
    return %arg0, %c0_i32, %c0_i32_0 : i32, i32, i32
  }
}

</mosaic_0001>

<llo_original>
// kernel: transition_block.3
$region0: #{transition_block.3}
  #allocation0 [shape = 'u32[]', space=smem, size = 0x4, offset = 0x4, fixed_abs, tag = 'smem constant byte address 0x4 - core index']
  #allocation1 [shape = 'u32[72,128]{1,0:T(1,128)}', space=vmem, size = 0x9000, scoped, tag = 'internal scratch']
  %s0 = inlined_call_operand.vmem [shape: f32[2,64,8], index: 0, kind: input, shape index: {}, may-alias: {0,3}]
  %s1 = inlined_call_operand.vmem [shape: f32[1,8], index: 1, kind: input, shape index: {}]
  %s2 = inlined_call_operand.vmem [shape: f32[1,8], index: 2, kind: input, shape index: {}]
  %s3 = inlined_call_operand.vmem [shape: f32[2,64,8], index: 3, kind: output, shape index: {}, may-alias: {0,3}]
  %s4 = sld [smem:[#allocation0]]
  $region45: #{transition_block.3} parent=0
    _
  %s6 = ssub.s32 1, %s4
  %s7 = scalar_select 0, %s6, %s4
  loop: start=0, step=1, limit=4
  $region2: #{transition_block.3} parent=0 // loop_pre_header
    _
  $region3: #{transition_block.3} parent=0 // loop_header
    %s9 = sphi 0, %s13
    %p10 = scmp.ge.s32.totalorder %s9, 4
    %s19 = sphi 0, %s21
    %s22 = sphi 0, %s19
    %s23 = sphi 0, %s22
    %s39 = sphi 0, %s23
    %s43 = sphi 0, %s43
    %s45 = sphi 0, %s43
    %s46 = sphi 0, %s45
    %s60 = sphi 0, %s46
    %s64 = sphi 0, %s64
    %s66 = sphi 0, %s64
    %s67 = sphi 0, %s66
    %s81 = sphi 0, %s67
    %s87 = sphi 0, %s89
    %s90 = sphi 0, %s87
    %s91 = sphi 0, %s90
    %s107 = sphi 0, %s91
  $region4: #{transition_block.3} parent=0 // loop_header_branch
    %12 = sbr.rel (%p10) target = $region8
  $region5: #{transition_block.3} parent=0 // loop_body
    %s14 = ssub.s32 %s9, 1
    %s15 = ssub.s32 %s9, 2
    %s16 = sadd.s32 %s9, 1
    %s17 = ssub.s32 %s9, %s16
    %p18 = scmp.eq.s32.totalorder %s17, 0
    %s20 = sadd.s32 %s19, 1
    %s21 = scalar_select %p18, %s19, %s20
    %p24 = pneg %p18
    %p25 = scmp.eq.s32.totalorder %s9, 1
    %p26 = por %p24, %p25
    %p27 = scmp.ne.s32.totalorder %s19, %s22
    %p28 = scmp.eq.s32.totalorder %s9, 0
    %p29 = por %p27, %p28
    %p30 = scmp.ne.s32.totalorder %s19, %s22
    %p31 = scmp.eq.s32.totalorder %s14, 1
    %p32 = por %p30, %p31
    %p33 = scmp.ne.s32.totalorder %s22, %s23
    %p34 = scmp.eq.s32.totalorder %s14, 0
    %p35 = por %p33, %p34
    %p36 = scmp.ne.s32.totalorder %s22, %s23
    %p37 = scmp.eq.s32.totalorder %s15, 1
    %p38 = por %p36, %p37
    %p40 = scmp.ne.s32.totalorder %s23, %s39
    %p41 = scmp.eq.s32.totalorder %s15, 0
    %p42 = por %p40, %p41
    %s44 = sadd.s32 %s43, 1
    %p47 = scmp.eq.s32.totalorder %s9, 1
    %p48 = scmp.ne.s32.totalorder %s43, %s45
    %p49 = scmp.eq.s32.totalorder %s9, 0
    %p50 = por %p48, %p49
    %p51 = scmp.ne.s32.totalorder %s43, %s45
    %p52 = scmp.eq.s32.totalorder %s14, 1
    %p53 = por %p51, %p52
    %p54 = scmp.ne.s32.totalorder %s45, %s46
    %p55 = scmp.eq.s32.totalorder %s14, 0
    %p56 = por %p54, %p55
    %p57 = scmp.ne.s32.totalorder %s45, %s46
    %p58 = scmp.eq.s32.totalorder %s15, 1
    %p59 = por %p57, %p58
    %p61 = scmp.ne.s32.totalorder %s46, %s60
    %p62 = scmp.eq.s32.totalorder %s15, 0
    %p63 = por %p61, %p62
    %s65 = sadd.s32 %s64, 1
    %p68 = scmp.eq.s32.totalorder %s9, 1
    %p69 = scmp.ne.s32.totalorder %s64, %s66
    %p70 = scmp.eq.s32.totalorder %s9, 0
    %p71 = por %p69, %p70
    %p72 = scmp.ne.s32.totalorder %s64, %s66
    %p73 = scmp.eq.s32.totalorder %s14, 1
    %p74 = por %p72, %p73
    %p75 = scmp.ne.s32.totalorder %s66, %s67
    %p76 = scmp.eq.s32.totalorder %s14, 0
    %p77 = por %p75, %p76
    %p78 = scmp.ne.s32.totalorder %s66, %s67
    %p79 = scmp.eq.s32.totalorder %s15, 1
    %p80 = por %p78, %p79
    %p82 = scmp.ne.s32.totalorder %s67, %s81
    %p83 = scmp.eq.s32.totalorder %s15, 0
    %p84 = por %p82, %p83
    %s85 = ssub.s32 %s9, %s16
    %p86 = scmp.eq.s32.totalorder %s85, 0
    %s88 = sadd.s32 %s87, 1
    %s89 = scalar_select %p86, %s87, %s88
    %p92 = pneg %p86
    %p93 = scmp.eq.s32.totalorder %s9, 1
    %p94 = por %p92, %p93
    %p95 = scmp.ne.s32.totalorder %s87, %s90
    %p96 = scmp.eq.s32.totalorder %s9, 0
    %p97 = por %p95, %p96
    %p98 = scmp.ne.s32.totalorder %s87, %s90
    %p99 = scmp.eq.s32.totalorder %s14, 1
    %p100 = por %p98, %p99
    %p101 = scmp.ne.s32.totalorder %s90, %s91
    %p102 = scmp.eq.s32.totalorder %s14, 0
    %p103 = por %p101, %p102
    %p104 = scmp.ne.s32.totalorder %s90, %s91
    %p105 = scmp.eq.s32.totalorder %s15, 1
    %p106 = por %p104, %p105
    %p108 = scmp.ne.s32.totalorder %s91, %s107
    %p109 = scmp.eq.s32.totalorder %s15, 0
    %p110 = por %p108, %p109
    %p111 = scmp.le.s32.totalorder 1, %s9
    %p112 = scmp.lt.s32.totalorder %s9, 3
    %p113 = pnand %p111, %p112
    %p114 = pneg %p113
    // Predicated region
    $region9: #{transition_block.3} parent=5 // pred_check
      _
    $region10: #{transition_block.3} parent=5 // pred_check_branch
      %116 = sbr.rel (%p113) target = $region12
    $region11: #{transition_block.3} parent=5 // pred_region
      %s117 = ssub.s32 %s9, 1
      // Predicated region
      $region13: #{transition_block.3} parent=11 // pred_check
        %p118 = pneg %p56
      $region14: #{transition_block.3} parent=11 // pred_check_branch
        %120 = sbr.rel (%p118) target = $region16
      $region15: #{transition_block.3} parent=11 // pred_region
        _
      $region16: #{transition_block.3} parent=11 // pred_fallthru
        _
      // Predicated region
      $region17: #{transition_block.3} parent=11 // pred_check
        %p121 = pneg %p77
      $region18: #{transition_block.3} parent=11 // pred_check_branch
        %123 = sbr.rel (%p121) target = $region20
      $region19: #{transition_block.3} parent=11 // pred_region
        _
      $region20: #{transition_block.3} parent=11 // pred_fallthru
        _
    $region12: #{transition_block.3} parent=5 // pred_fallthru
      _
    %p124 = scmp.lt.s32.totalorder %s9, 2
    // Predicated region
    $region21: #{transition_block.3} parent=5 // pred_check
      %p125 = pneg %p124
    $region22: #{transition_block.3} parent=5 // pred_check_branch
      %127 = sbr.rel (%p125) target = $region24
    $region23: #{transition_block.3} parent=5 // pred_region
      // Predicated region
      $region25: #{transition_block.3} parent=23 // pred_check
        %p128 = pneg %p29
      $region26: #{transition_block.3} parent=23 // pred_check_branch
        %130 = sbr.rel (%p128) target = $region28
      $region27: #{transition_block.3} parent=23 // pred_region
        %p131 = scmp.lt.s32.totalorder %s9, 1
        %s132 = scalar_select %p131, %s9, 1
        %s133 = smul.addr %s132, 8
        %s134 = smul.addr %s133, 8
        %s135 = scalar_lea.vmem %s0, %s134
      $region28: #{transition_block.3} parent=23 // pred_fallthru
        _
    $region24: #{transition_block.3} parent=5 // pred_fallthru
      _
    %p136 = scmp.le.s32.totalorder 1, %s9
    %p137 = scmp.lt.s32.totalorder %s9, 3
    %p138 = pnand %p136, %p137
    %p139 = pneg %p138
    // Predicated region
    $region29: #{transition_block.3} parent=5 // pred_check
      _
    $region30: #{transition_block.3} parent=5 // pred_check_branch
      %141 = sbr.rel (%p138) target = $region32
    $region31: #{transition_block.3} parent=5 // pred_region
      %s142 = ssub.s32 %s9, 1
      %p143 = scmp.lt.s32.totalorder %s14, 1
      %s144 = scalar_select %p143, %s14, 1
      %s145 = smul.addr %s144, 8
      %s146 = smul.addr %s145, 8
      %s147 = scalar_lea.vmem %s0, %s146
      %p148 = pneg %p35
      %p149 = pneg %p32
      %p150 = pneg %p56
      %p151 = pneg %p53
      %p152 = pneg %p77
      %p153 = pneg %p74
      %p154 = pneg %p103
      %p155 = pneg %p100
      %p156 = scmp.lt.s32.totalorder %s14, 1
      %s157 = scalar_select %p156, %s14, 1
      %s158 = smul.addr %s157, 8
      %s159 = smul.addr %s158, 8
      %s160 = scalar_lea.vmem %s3, %s159
      %p161 = scmp.lt.s32.totalorder %s14, 1
      %s162 = scalar_select %p161, %s14, 1
      %s163 = smul.addr %s162, 8
      %s164 = smul.addr %s163, 8
      %s165 = scalar_lea.vmem %s0, %s164
      %p166 = scmp.lt.s32.totalorder %s14, 1
      %s167 = scalar_select %p166, %s14, 1
      %s168 = smul.addr %s167, 8
      %s169 = smul.addr %s168, 8
      %s170 = scalar_lea.vmem %s3, %s169
      %v171 = vld [vmem:[%s165] sm:$0xff]
      %v172 = vld [vmem:[%s165 + $0x8] sm:$0xff]
      %v173 = vld [vmem:[%s165 + $0x10] sm:$0xff]
      %v174 = vld [vmem:[%s165 + $0x18] sm:$0xff]
      %v175 = vld [vmem:[%s165 + $0x20] sm:$0xff]
      %v176 = vld [vmem:[%s165 + $0x28] sm:$0xff]
      %v177 = vld [vmem:[%s165 + $0x30] sm:$0xff]
      %v178 = vld [vmem:[%s165 + $0x38] sm:$0xff]
      %v179 = vld [vmem:[%s1] sm:$0x1]
      %v181 = vperm.slane %v179, 0
      %v183 = vmul.f32 %v171, %v181
      %v184 = vmul.f32 %v172, %v181
      %v185 = vmul.f32 %v173, %v181
      %v186 = vmul.f32 %v174, %v181
      %v187 = vmul.f32 %v175, %v181
      %v188 = vmul.f32 %v176, %v181
      %v189 = vmul.f32 %v177, %v181
      %v190 = vmul.f32 %v178, %v181
      %v191 = vld [vmem:[%s2] sm:$0x1]
      %v193 = vperm.slane %v191, 0
      %v195 = vadd.f32 %v183, %v193
      %v196 = vadd.f32 %v184, %v193
      %v197 = vadd.f32 %v185, %v193
      %v198 = vadd.f32 %v186, %v193
      %v199 = vadd.f32 %v187, %v193
      %v200 = vadd.f32 %v188, %v193
      %v201 = vadd.f32 %v189, %v193
      %v202 = vadd.f32 %v190, %v193
      %v203 = vmul.f32 %v195, 0.5
      %v204 = vmul.f32 %v196, 0.5
      %v205 = vmul.f32 %v197, 0.5
      %v206 = vmul.f32 %v198, 0.5
      %v207 = vmul.f32 %v199, 0.5
      %v208 = vmul.f32 %v200, 0.5
      %v209 = vmul.f32 %v201, 0.5
      %v210 = vmul.f32 %v202, 0.5
      %v211 = vmul.f32 %v195, 0.70710677
      %v212 = vmul.f32 %v196, 0.70710677
      %v213 = vmul.f32 %v197, 0.70710677
      %v214 = vmul.f32 %v198, 0.70710677
      %v215 = vmul.f32 %v199, 0.70710677
      %v216 = vmul.f32 %v200, 0.70710677
      %v217 = vmul.f32 %v201, 0.70710677
      %v218 = vmul.f32 %v202, 0.70710677
      %v219 = vand.u32 2147483647, %v211
      %v220 = vand.u32 2147483647, %v212
      %v221 = vand.u32 2147483647, %v213
      %v222 = vand.u32 2147483647, %v214
      %v223 = vand.u32 2147483647, %v215
      %v224 = vand.u32 2147483647, %v216
      %v225 = vand.u32 2147483647, %v217
      %v226 = vand.u32 2147483647, %v218
      %v227 = vmul.f32 %v219, 0.3275911
      %v228 = vmul.f32 %v220, 0.3275911
      %v229 = vmul.f32 %v221, 0.3275911
      %v230 = vmul.f32 %v222, 0.3275911
      %v231 = vmul.f32 %v223, 0.3275911
      %v232 = vmul.f32 %v224, 0.3275911
      %v233 = vmul.f32 %v225, 0.3275911
      %v234 = vmul.f32 %v226, 0.3275911
      %v235 = vadd.f32 %v227, 1.0
      %v236 = vadd.f32 %v228, 1.0
      %v237 = vadd.f32 %v229, 1.0
      %v238 = vadd.f32 %v230, 1.0
      %v239 = vadd.f32 %v231, 1.0
      %v240 = vadd.f32 %v232, 1.0
      %v241 = vadd.f32 %v233, 1.0
      %v242 = vadd.f32 %v234, 1.0
      %v243 = vrcp.pop %v235
      %v244 = vrcp.pop %v236
      %v245 = vrcp.pop %v237
      %v246 = vrcp.pop %v238
      %v247 = vrcp.pop %v239
      %v248 = vrcp.pop %v240
      %v249 = vrcp.pop %v241
      %v250 = vrcp.pop %v242
      %v251 = vmul.f32 %v243, 1.0614054
      %v252 = vmul.f32 %v244, 1.0614054
      %v253 = vmul.f32 %v245, 1.0614054
      %v254 = vmul.f32 %v246, 1.0614054
      %v255 = vmul.f32 %v247, 1.0614054
      %v256 = vmul.f32 %v248, 1.0614054
      %v257 = vmul.f32 %v249, 1.0614054
      %v258 = vmul.f32 %v250, 1.0614054
      %v259 = vadd.f32 %v251, -1.4531521
      %v260 = vadd.f32 %v252, -1.4531521
      %v261 = vadd.f32 %v253, -1.4531521
      %v262 = vadd.f32 %v254, -1.4531521
      %v263 = vadd.f32 %v255, -1.4531521
      %v264 = vadd.f32 %v256, -1.4531521
      %v265 = vadd.f32 %v257, -1.4531521
      %v266 = vadd.f32 %v258, -1.4531521
      %v267 = vmul.f32 %v259, %v243
      %v268 = vmul.f32 %v260, %v244
      %v269 = vmul.f32 %v261, %v245
      %v270 = vmul.f32 %v262, %v246
      %v271 = vmul.f32 %v263, %v247
      %v272 = vmul.f32 %v264, %v248
      %v273 = vmul.f32 %v265, %v249
      %v274 = vmul.f32 %v266, %v250
      %v275 = vadd.f32 %v267, 1.4214138
      %v276 = vadd.f32 %v268, 1.4214138
      %v277 = vadd.f32 %v269, 1.4214138
      %v278 = vadd.f32 %v270, 1.4214138
      %v279 = vadd.f32 %v271, 1.4214138
      %v280 = vadd.f32 %v272, 1.4214138
      %v281 = vadd.f32 %v273, 1.4214138
      %v282 = vadd.f32 %v274, 1.4214138
      %v283 = vmul.f32 %v275, %v243
      %v284 = vmul.f32 %v276, %v244
      %v285 = vmul.f32 %v277, %v245
      %v286 = vmul.f32 %v278, %v246
      %v287 = vmul.f32 %v279, %v247
      %v288 = vmul.f32 %v280, %v248
      %v289 = vmul.f32 %v281, %v249
      %v290 = vmul.f32 %v282, %v250
      %v291 = vadd.f32 %v283, -0.28449672
      %v292 = vadd.f32 %v284, -0.28449672
      %v293 = vadd.f32 %v285, -0.28449672
      %v294 = vadd.f32 %v286, -0.28449672
      %v295 = vadd.f32 %v287, -0.28449672
      %v296 = vadd.f32 %v288, -0.28449672
      %v297 = vadd.f32 %v289, -0.28449672
      %v298 = vadd.f32 %v290, -0.28449672
      %v299 = vmul.f32 %v291, %v243
      %v300 = vmul.f32 %v292, %v244
      %v301 = vmul.f32 %v293, %v245
      %v302 = vmul.f32 %v294, %v246
      %v303 = vmul.f32 %v295, %v247
      %v304 = vmul.f32 %v296, %v248
      %v305 = vmul.f32 %v297, %v249
      %v306 = vmul.f32 %v298, %v250
      %v307 = vadd.f32 %v299, 0.2548296
      %v308 = vadd.f32 %v300, 0.2548296
      %v309 = vadd.f32 %v301, 0.2548296
      %v310 = vadd.f32 %v302, 0.2548296
      %v311 = vadd.f32 %v303, 0.2548296
      %v312 = vadd.f32 %v304, 0.2548296
      %v313 = vadd.f32 %v305, 0.2548296
      %v314 = vadd.f32 %v306, 0.2548296
      %v315 = vmul.f32 %v307, %v243
      %v316 = vmul.f32 %v308, %v244
      %v317 = vmul.f32 %v309, %v245
      %v318 = vmul.f32 %v310, %v246
      %v319 = vmul.f32 %v311, %v247
      %v320 = vmul.f32 %v312, %v248
      %v321 = vmul.f32 %v313, %v249
      %v322 = vmul.f32 %v314, %v250
      %v323 = vsub.f32 0.0, %v219
      %v324 = vsub.f32 0.0, %v220
      %v325 = vsub.f32 0.0, %v221
      %v326 = vsub.f32 0.0, %v222
      %v327 = vsub.f32 0.0, %v223
      %v328 = vsub.f32 0.0, %v224
      %v329 = vsub.f32 0.0, %v225
      %v330 = vsub.f32 0.0, %v226
      %v331 = vmul.f32 %v323, %v219
      %v332 = vmul.f32 %v324, %v220
      %v333 = vmul.f32 %v325, %v221
      %v334 = vmul.f32 %v326, %v222
      %v335 = vmul.f32 %v327, %v223
      %v336 = vmul.f32 %v328, %v224
      %v337 = vmul.f32 %v329, %v225
      %v338 = vmul.f32 %v330, %v226
      %v339 = vmul.f32 %v331, 1.442695
      %v340 = vpow.pop %v339
      %v341 = vmul.f32 %v332, 1.442695
      %v342 = vpow.pop %v341
      %v343 = vmul.f32 %v333, 1.442695
      %v344 = vpow.pop %v343
      %v345 = vmul.f32 %v334, 1.442695
      %v346 = vpow.pop %v345
      %v347 = vmul.f32 %v335, 1.442695
      %v348 = vpow.pop %v347
      %v349 = vmul.f32 %v336, 1.442695
      %v350 = vpow.pop %v349
      %v351 = vmul.f32 %v337, 1.442695
      %v352 = vpow.pop %v351
      %v353 = vmul.f32 %v338, 1.442695
      %v354 = vpow.pop %v353
      %v355 = vmul.f32 %v315, %v340
      %v356 = vmul.f32 %v316, %v342
      %v357 = vmul.f32 %v317, %v344
      %v358 = vmul.f32 %v318, %v346
      %v359 = vmul.f32 %v319, %v348
      %v360 = vmul.f32 %v320, %v350
      %v361 = vmul.f32 %v321, %v352
      %v362 = vmul.f32 %v322, %v354
      %v363 = vsub.f32 1.0, %v355
      %v364 = vsub.f32 1.0, %v356
      %v365 = vsub.f32 1.0, %v357
      %v366 = vsub.f32 1.0, %v358
      %v367 = vsub.f32 1.0, %v359
      %v368 = vsub.f32 1.0, %v360
      %v369 = vsub.f32 1.0, %v361
      %v370 = vsub.f32 1.0, %v362
      %vm371 = vcmp.ge.f32.partialorder %v211, 0.0
      %vm372 = vcmp.ge.f32.partialorder %v212, 0.0
      %vm373 = vcmp.ge.f32.partialorder %v213, 0.0
      %vm374 = vcmp.ge.f32.partialorder %v214, 0.0
      %vm375 = vcmp.ge.f32.partialorder %v215, 0.0
      %vm376 = vcmp.ge.f32.partialorder %v216, 0.0
      %vm377 = vcmp.ge.f32.partialorder %v217, 0.0
      %vm378 = vcmp.ge.f32.partialorder %v218, 0.0
      %v379 = vsub.f32 0.0, %v363
      %v380 = vsub.f32 0.0, %v364
      %v381 = vsub.f32 0.0, %v365
      %v382 = vsub.f32 0.0, %v366
      %v383 = vsub.f32 0.0, %v367
      %v384 = vsub.f32 0.0, %v368
      %v385 = vsub.f32 0.0, %v369
      %v386 = vsub.f32 0.0, %v370
      %v387 = vsel %vm371, %v363, %v379
      %v388 = vsel %vm372, %v364, %v380
      %v389 = vsel %vm373, %v365, %v381
      %v390 = vsel %vm374, %v366, %v382
      %v391 = vsel %vm375, %v367, %v383
      %v392 = vsel %vm376, %v368, %v384
      %v393 = vsel %vm377, %v369, %v385
      %v394 = vsel %vm378, %v370, %v386
      %v395 = vadd.f32 %v387, 1.0
      %v396 = vadd.f32 %v388, 1.0
      %v397 = vadd.f32 %v389, 1.0
      %v398 = vadd.f32 %v390, 1.0
      %v399 = vadd.f32 %v391, 1.0
      %v400 = vadd.f32 %v392, 1.0
      %v401 = vadd.f32 %v393, 1.0
      %v402 = vadd.f32 %v394, 1.0
      %v403 = vmul.f32 %v203, %v395
      %v404 = vmul.f32 %v204, %v396
      %v405 = vmul.f32 %v205, %v397
      %v406 = vmul.f32 %v206, %v398
      %v407 = vmul.f32 %v207, %v399
      %v408 = vmul.f32 %v208, %v400
      %v409 = vmul.f32 %v209, %v401
      %v410 = vmul.f32 %v210, %v402
      %vm411 = vcmask 64512
      %412 = vst.msk [vmem:[%s170] sm:$0xff] %vm411, %v403
      %413 = vst.msk [vmem:[%s170 + $0x8] sm:$0xff] %vm411, %v404
      %414 = vst.msk [vmem:[%s170 + $0x10] sm:$0xff] %vm411, %v405
      %415 = vst.msk [vmem:[%s170 + $0x18] sm:$0xff] %vm411, %v406
      %416 = vst.msk [vmem:[%s170 + $0x20] sm:$0xff] %vm411, %v407
      %417 = vst.msk [vmem:[%s170 + $0x28] sm:$0xff] %vm411, %v408
      %418 = vst.msk [vmem:[%s170 + $0x30] sm:$0xff] %vm411, %v409
      %419 = vst.msk [vmem:[%s170 + $0x38] sm:$0xff] %vm411, %v410
      %p420 = scmp.lt.s32.totalorder %s14, 1
      %s421 = scalar_select %p420, %s14, 1
      %s422 = smul.addr %s421, 8
      %s423 = smul.addr %s422, 8
      %s424 = scalar_lea.vmem %s3, %s423
      // Predicated region
      $region33: #{transition_block.3} parent=31 // pred_check
        %p425 = pneg %p100
      $region34: #{transition_block.3} parent=31 // pred_check_branch
        %427 = sbr.rel (%p425) target = $region36
      $region35: #{transition_block.3} parent=31 // pred_region
        _
      $region36: #{transition_block.3} parent=31 // pred_fallthru
        _
    $region32: #{transition_block.3} parent=5 // pred_fallthru
      _
    %p428 = scmp.le.s32.totalorder 2, %s9
    // Predicated region
    $region37: #{transition_block.3} parent=5 // pred_check
      %p429 = pneg %p428
    $region38: #{transition_block.3} parent=5 // pred_check_branch
      %431 = sbr.rel (%p429) target = $region40
    $region39: #{transition_block.3} parent=5 // pred_region
      %s432 = ssub.s32 %s9, 2
      // Predicated region
      $region41: #{transition_block.3} parent=39 // pred_check
        %p433 = pneg %p106
      $region42: #{transition_block.3} parent=39 // pred_check_branch
        %435 = sbr.rel (%p433) target = $region44
      $region43: #{transition_block.3} parent=39 // pred_region
        %p436 = scmp.lt.s32.totalorder %s15, 1
        %s437 = scalar_select %p436, %s15, 1
        %s438 = smul.addr %s437, 8
        %s439 = smul.addr %s438, 8
        %s440 = scalar_lea.vmem %s3, %s439
      $region44: #{transition_block.3} parent=39 // pred_fallthru
        _
    $region40: #{transition_block.3} parent=5 // pred_fallthru
      _
  $region6: #{transition_block.3} parent=0 // loop_footer
    %s13 = sadd.s32 1, %s9
  $region7: #{transition_block.3} parent=0 // loop_footer_branch
    %8 = sbr.rel target = $region3
  $region8: #{transition_block.3} parent=0 // loop_exit
    _

// kernel: transition_block.2
$region0: #{transition_block.2}
  #allocation0 [shape = 'u32[]', space=smem, size = 0x4, offset = 0x4, fixed_abs, tag = 'smem constant byte address 0x4 - core index']
  #allocation1 [shape = 'u32[72,128]{1,0:T(1,128)}', space=vmem, size = 0x9000, scoped, tag = 'internal scratch']
  #allocation2 [shape = 'f32[10,10,24]{2,1,0:T(8,128)}', space=vmem, size = 0x14000, scoped, tag = 'scratch operand']
  %s0 = inlined_call_operand.vmem [shape: f32[2,9,9,16], index: 0, kind: input, shape index: {}]
  %s1 = inlined_call_operand.vmem [shape: f32[4,16,4], index: 1, kind: input, shape index: {}]
  %s2 = inlined_call_operand.vmem [shape: f32[1,4], index: 2, kind: input, shape index: {}]
  %s3 = inlined_call_operand.vmem [shape: f32[3,24,8], index: 3, kind: input, shape index: {}]
  %s4 = inlined_call_operand.vmem [shape: f32[1,8], index: 4, kind: input, shape index: {}]
  %s5 = inlined_call_operand.vmem [shape: f32[2,64,8], index: 5, kind: output, shape index: {0}]
  %s6 = inlined_call_operand.vmem [shape: f32[2,2,8], index: 6, kind: output, shape index: {1}]
  %7 = xla_tuple %s5, %s6
  %s8 = sld [smem:[#allocation0]]
  $region61: #{transition_block.2} parent=0
    _
  %s10 = ssub.s32 1, %s8
  %s11 = scalar_select 0, %s10, %s8
  loop: start=0, step=1, limit=4
  $region2: #{transition_block.2} parent=0 // loop_pre_header
    _
  $region3: #{transition_block.2} parent=0 // loop_header
    %s13 = sphi 0, %s17
    %p14 = scmp.ge.s32.totalorder %s13, 4
    %s23 = sphi 0, %s25
    %s26 = sphi 0, %s23
    %s27 = sphi 0, %s26
    %s43 = sphi 0, %s27
    %s47 = sphi 0, %s47
    %s49 = sphi 0, %s47
    %s50 = sphi 0, %s49
    %s64 = sphi 0, %s50
    %s68 = sphi 0, %s68
    %s70 = sphi 0, %s68
    %s71 = sphi 0, %s70
    %s85 = sphi 0, %s71
    %s89 = sphi 0, %s89
    %s91 = sphi 0, %s89
    %s92 = sphi 0, %s91
    %s106 = sphi 0, %s92
    %s110 = sphi 0, %s110
    %s112 = sphi 0, %s110
    %s113 = sphi 0, %s112
    %s127 = sphi 0, %s113
    %s133 = sphi 0, %s135
    %s136 = sphi 0, %s133
    %s137 = sphi 0, %s136
    %s153 = sphi 0, %s137
    %s159 = sphi 0, %s161
    %s162 = sphi 0, %s159
    %s163 = sphi 0, %s162
    %s179 = sphi 0, %s163
  $region4: #{transition_block.2} parent=0 // loop_header_branch
    %16 = sbr.rel (%p14) target = $region8
  $region5: #{transition_block.2} parent=0 // loop_body
    %s18 = ssub.s32 %s13, 1
    %s19 = ssub.s32 %s13, 2
    %s20 = sadd.s32 %s13, 1
    %s21 = ssub.s32 %s13, %s20
    %p22 = scmp.eq.s32.totalorder %s21, 0
    %s24 = sadd.s32 %s23, 1
    %s25 = scalar_select %p22, %s23, %s24
    %p28 = pneg %p22
    %p29 = scmp.eq.s32.totalorder %s13, 1
    %p30 = por %p28, %p29
    %p31 = scmp.ne.s32.totalorder %s23, %s26
    %p32 = scmp.eq.s32.totalorder %s13, 0
    %p33 = por %p31, %p32
    %p34 = scmp.ne.s32.totalorder %s23, %s26
    %p35 = scmp.eq.s32.totalorder %s18, 1
    %p36 = por %p34, %p35
    %p37 = scmp.ne.s32.totalorder %s26, %s27
    %p38 = scmp.eq.s32.totalorder %s18, 0
    %p39 = por %p37, %p38
    %p40 = scmp.ne.s32.totalorder %s26, %s27
    %p41 = scmp.eq.s32.totalorder %s19, 1
    %p42 = por %p40, %p41
    %p44 = scmp.ne.s32.totalorder %s27, %s43
    %p45 = scmp.eq.s32.totalorder %s19, 0
    %p46 = por %p44, %p45
    %s48 = sadd.s32 %s47, 1
    %p51 = scmp.eq.s32.totalorder %s13, 1
    %p52 = scmp.ne.s32.totalorder %s47, %s49
    %p53 = scmp.eq.s32.totalorder %s13, 0
    %p54 = por %p52, %p53
    %p55 = scmp.ne.s32.totalorder %s47, %s49
    %p56 = scmp.eq.s32.totalorder %s18, 1
    %p57 = por %p55, %p56
    %p58 = scmp.ne.s32.totalorder %s49, %s50
    %p59 = scmp.eq.s32.totalorder %s18, 0
    %p60 = por %p58, %p59
    %p61 = scmp.ne.s32.totalorder %s49, %s50
    %p62 = scmp.eq.s32.totalorder %s19, 1
    %p63 = por %p61, %p62
    %p65 = scmp.ne.s32.totalorder %s50, %s64
    %p66 = scmp.eq.s32.totalorder %s19, 0
    %p67 = por %p65, %p66
    %s69 = sadd.s32 %s68, 1
    %p72 = scmp.eq.s32.totalorder %s13, 1
    %p73 = scmp.ne.s32.totalorder %s68, %s70
    %p74 = scmp.eq.s32.totalorder %s13, 0
    %p75 = por %p73, %p74
    %p76 = scmp.ne.s32.totalorder %s68, %s70
    %p77 = scmp.eq.s32.totalorder %s18, 1
    %p78 = por %p76, %p77
    %p79 = scmp.ne.s32.totalorder %s70, %s71
    %p80 = scmp.eq.s32.totalorder %s18, 0
    %p81 = por %p79, %p80
    %p82 = scmp.ne.s32.totalorder %s70, %s71
    %p83 = scmp.eq.s32.totalorder %s19, 1
    %p84 = por %p82, %p83
    %p86 = scmp.ne.s32.totalorder %s71, %s85
    %p87 = scmp.eq.s32.totalorder %s19, 0
    %p88 = por %p86, %p87
    %s90 = sadd.s32 %s89, 1
    %p93 = scmp.eq.s32.totalorder %s13, 1
    %p94 = scmp.ne.s32.totalorder %s89, %s91
    %p95 = scmp.eq.s32.totalorder %s13, 0
    %p96 = por %p94, %p95
    %p97 = scmp.ne.s32.totalorder %s89, %s91
    %p98 = scmp.eq.s32.totalorder %s18, 1
    %p99 = por %p97, %p98
    %p100 = scmp.ne.s32.totalorder %s91, %s92
    %p101 = scmp.eq.s32.totalorder %s18, 0
    %p102 = por %p100, %p101
    %p103 = scmp.ne.s32.totalorder %s91, %s92
    %p104 = scmp.eq.s32.totalorder %s19, 1
    %p105 = por %p103, %p104
    %p107 = scmp.ne.s32.totalorder %s92, %s106
    %p108 = scmp.eq.s32.totalorder %s19, 0
    %p109 = por %p107, %p108
    %s111 = sadd.s32 %s110, 1
    %p114 = scmp.eq.s32.totalorder %s13, 1
    %p115 = scmp.ne.s32.totalorder %s110, %s112
    %p116 = scmp.eq.s32.totalorder %s13, 0
    %p117 = por %p115, %p116
    %p118 = scmp.ne.s32.totalorder %s110, %s112
    %p119 = scmp.eq.s32.totalorder %s18, 1
    %p120 = por %p118, %p119
    %p121 = scmp.ne.s32.totalorder %s112, %s113
    %p122 = scmp.eq.s32.totalorder %s18, 0
    %p123 = por %p121, %p122
    %p124 = scmp.ne.s32.totalorder %s112, %s113
    %p125 = scmp.eq.s32.totalorder %s19, 1
    %p126 = por %p124, %p125
    %p128 = scmp.ne.s32.totalorder %s113, %s127
    %p129 = scmp.eq.s32.totalorder %s19, 0
    %p130 = por %p128, %p129
    %s131 = ssub.s32 %s13, %s20
    %p132 = scmp.eq.s32.totalorder %s131, 0
    %s134 = sadd.s32 %s133, 1
    %s135 = scalar_select %p132, %s133, %s134
    %p138 = pneg %p132
    %p139 = scmp.eq.s32.totalorder %s13, 1
    %p140 = por %p138, %p139
    %p141 = scmp.ne.s32.totalorder %s133, %s136
    %p142 = scmp.eq.s32.totalorder %s13, 0
    %p143 = por %p141, %p142
    %p144 = scmp.ne.s32.totalorder %s133, %s136
    %p145 = scmp.eq.s32.totalorder %s18, 1
    %p146 = por %p144, %p145
    %p147 = scmp.ne.s32.totalorder %s136, %s137
    %p148 = scmp.eq.s32.totalorder %s18, 0
    %p149 = por %p147, %p148
    %p150 = scmp.ne.s32.totalorder %s136, %s137
    %p151 = scmp.eq.s32.totalorder %s19, 1
    %p152 = por %p150, %p151
    %p154 = scmp.ne.s32.totalorder %s137, %s153
    %p155 = scmp.eq.s32.totalorder %s19, 0
    %p156 = por %p154, %p155
    %s157 = ssub.s32 %s13, %s20
    %p158 = scmp.eq.s32.totalorder %s157, 0
    %s160 = sadd.s32 %s159, 1
    %s161 = scalar_select %p158, %s159, %s160
    %p164 = pneg %p158
    %p165 = scmp.eq.s32.totalorder %s13, 1
    %p166 = por %p164, %p165
    %p167 = scmp.ne.s32.totalorder %s159, %s162
    %p168 = scmp.eq.s32.totalorder %s13, 0
    %p169 = por %p167, %p168
    %p170 = scmp.ne.s32.totalorder %s159, %s162
    %p171 = scmp.eq.s32.totalorder %s18, 1
    %p172 = por %p170, %p171
    %p173 = scmp.ne.s32.totalorder %s162, %s163
    %p174 = scmp.eq.s32.totalorder %s18, 0
    %p175 = por %p173, %p174
    %p176 = scmp.ne.s32.totalorder %s162, %s163
    %p177 = scmp.eq.s32.totalorder %s19, 1
    %p178 = por %p176, %p177
    %p180 = scmp.ne.s32.totalorder %s163, %s179
    %p181 = scmp.eq.s32.totalorder %s19, 0
    %p182 = por %p180, %p181
    %p183 = scmp.le.s32.totalorder 1, %s13
    %p184 = scmp.lt.s32.totalorder %s13, 3
    %p185 = pnand %p183, %p184
    %p186 = pneg %p185
    // Predicated region
    $region9: #{transition_block.2} parent=5 // pred_check
      _
    $region10: #{transition_block.2} parent=5 // pred_check_branch
      %188 = sbr.rel (%p185) target = $region12
    $region11: #{transition_block.2} parent=5 // pred_region
      %s189 = ssub.s32 %s13, 1
      // Predicated region
      $region13: #{transition_block.2} parent=11 // pred_check
        %p190 = pneg %p60
      $region14: #{transition_block.2} parent=11 // pred_check_branch
        %192 = sbr.rel (%p190) target = $region16
      $region15: #{transition_block.2} parent=11 // pred_region
        _
      $region16: #{transition_block.2} parent=11 // pred_fallthru
        _
      // Predicated region
      $region17: #{transition_block.2} parent=11 // pred_check
        %p193 = pneg %p81
      $region18: #{transition_block.2} parent=11 // pred_check_branch
        %195 = sbr.rel (%p193) target = $region20
      $region19: #{transition_block.2} parent=11 // pred_region
        _
      $region20: #{transition_block.2} parent=11 // pred_fallthru
        _
      // Predicated region
      $region21: #{transition_block.2} parent=11 // pred_check
        %p196 = pneg %p102
      $region22: #{transition_block.2} parent=11 // pred_check_branch
        %198 = sbr.rel (%p196) target = $region24
      $region23: #{transition_block.2} parent=11 // pred_region
        _
      $region24: #{transition_block.2} parent=11 // pred_fallthru
        _
      // Predicated region
      $region25: #{transition_block.2} parent=11 // pred_check
        %p199 = pneg %p123
      $region26: #{transition_block.2} parent=11 // pred_check_branch
        %201 = sbr.rel (%p199) target = $region28
      $region27: #{transition_block.2} parent=11 // pred_region
        _
      $region28: #{transition_block.2} parent=11 // pred_fallthru
        _
    $region12: #{transition_block.2} parent=5 // pred_fallthru
      _
    %p202 = scmp.lt.s32.totalorder %s13, 2
    // Predicated region
    $region29: #{transition_block.2} parent=5 // pred_check
      %p203 = pneg %p202
    $region30: #{transition_block.2} parent=5 // pred_check_branch
      %205 = sbr.rel (%p203) target = $region32
    $region31: #{transition_block.2} parent=5 // pred_region
      // Predicated region
      $region33: #{transition_block.2} parent=31 // pred_check
        %p206 = pneg %p33
      $region34: #{transition_block.2} parent=31 // pred_check_branch
        %208 = sbr.rel (%p206) target = $region36
      $region35: #{transition_block.2} parent=31 // pred_region
        %p209 = scmp.lt.s32.totalorder %s13, 1
        %s210 = scalar_select %p209, %s13, 1
        %s211 = smul.addr %s210, 18
        %s212 = smul.addr %s211, 8
        %s213 = scalar_lea.vmem %s0, %s212
      $region36: #{transition_block.2} parent=31 // pred_fallthru
        _
    $region32: #{transition_block.2} parent=5 // pred_fallthru
      _
    %p214 = scmp.le.s32.totalorder 1, %s13
    %p215 = scmp.lt.s32.totalorder %s13, 3
    %p216 = pnand %p214, %p215
    %p217 = pneg %p216
    // Predicated region
    $region37: #{transition_block.2} parent=5 // pred_check
      _
    $region38: #{transition_block.2} parent=5 // pred_check_branch
      %219 = sbr.rel (%p216) target = $region40
    $region39: #{transition_block.2} parent=5 // pred_region
      %s220 = ssub.s32 %s13, 1
      %p221 = scmp.lt.s32.totalorder %s18, 1
      %s222 = scalar_select %p221, %s18, 1
      %s223 = smul.addr %s222, 18
      %s224 = smul.addr %s223, 8
      %s225 = scalar_lea.vmem %s0, %s224
      %p226 = pneg %p39
      %p227 = pneg %p36
      %p228 = pneg %p60
      %p229 = pneg %p57
      %p230 = pneg %p81
      %p231 = pneg %p78
      %p232 = pneg %p102
      %p233 = pneg %p99
      %p234 = pneg %p123
      %p235 = pneg %p120
      %p236 = pneg %p149
      %p237 = pneg %p146
      %p238 = scmp.lt.s32.totalorder %s18, 1
      %s239 = scalar_select %p238, %s18, 1
      %s240 = smul.addr %s239, 8
      %s241 = smul.addr %s240, 8
      %s242 = scalar_lea.vmem %s5, %s241
      %p243 = pneg %p175
      %p244 = pneg %p172
      %p245 = scmp.lt.s32.totalorder %s18, 1
      %s246 = scalar_select %p245, %s18, 1
      %s247 = smul.addr %s246, 2
      %s248 = scalar_lea.vmem %s6, %s247
      %p249 = scmp.lt.s32.totalorder %s18, 1
      %s250 = scalar_select %p249, %s18, 1
      %s251 = smul.addr %s250, 18
      %s252 = smul.addr %s251, 8
      %s253 = scalar_lea.vmem %s0, %s252
      %p254 = scmp.lt.s32.totalorder %s18, 1
      %s255 = scalar_select %p254, %s18, 1
      %s256 = smul.addr %s255, 8
      %s257 = smul.addr %s256, 8
      %s258 = scalar_lea.vmem %s5, %s257
      %p259 = scmp.lt.s32.totalorder %s18, 1
      %s260 = scalar_select %p259, %s18, 1
      %s261 = smul.addr %s260, 2
      %s262 = scalar_lea.vmem %s6, %s261
      %v263 = vld [vmem:[%s253] sm:$0xff]
      %v264 = vld [vmem:[%s253 + $0x10] sm:$0xff]
      %v265 = vld [vmem:[%s253 + $0x20] sm:$0xff]
      %v266 = vld [vmem:[%s253 + $0x30] sm:$0xff]
      %v267 = vld [vmem:[%s253 + $0x40] sm:$0xff]
      %v268 = vld [vmem:[%s253 + $0x50] sm:$0xff]
      %v269 = vld [vmem:[%s253 + $0x60] sm:$0xff]
      %v270 = vld [vmem:[%s253 + $0x70] sm:$0xff]
      %v271 = vld [vmem:[%s1] sm:$0xff]
      %v272 = vld [vmem:[%s1 + $0x8] sm:$0xff]
      %v273 = vld [vmem:[%s253 + $0x1] sm:$0xff]
      %v274 = vld [vmem:[%s253 + $0x11] sm:$0xff]
      %v275 = vld [vmem:[%s253 + $0x21] sm:$0xff]
      %v276 = vld [vmem:[%s253 + $0x31] sm:$0xff]
      %v277 = vld [vmem:[%s253 + $0x41] sm:$0xff]
      %v278 = vld [vmem:[%s253 + $0x51] sm:$0xff]
      %v279 = vld [vmem:[%s253 + $0x61] sm:$0xff]
      %v280 = vld [vmem:[%s253 + $0x71] sm:$0xff]
      %s281 = scalar_lea.vmem %s1, 16
      %v282 = vld [vmem:[%s281] sm:$0xff]
      %v283 = vld [vmem:[%s281 + $0x8] sm:$0xff]
      %vm284 = vcmask 130048
      %v286 = vsel %vm284, %v273, 0
      %v289 = vsel %vm284, %v274, 0
      %v292 = vsel %vm284, %v275, 0
      %v295 = vsel %vm284, %v276, 0
      %v298 = vsel %vm284, %v277, 0
      %v301 = vsel %vm284, %v278, 0
      %v304 = vsel %vm284, %v279, 0
      %v307 = vsel %vm284, %v280, 0
      %309 = vmatpush.msra.mxu0 0.0
      %310 = vmatpush.msra.mxu0 0.0
      %311 = vmatpush.msra.mxu0 0.0
      %312 = vmatpush.msra.mxu0 0.0
      %313 = vmatpush.msra.mxu0 0.0
      %314 = vmatpush.msra.mxu0 0.0
      %315 = vmatpush.msra.mxu0 0.0
      %316 = vmatpush.msra.mxu0 0.0
      %317 = vmatpush.msra.mxu0 0.0
      %318 = vmatpush.msra.mxu0 0.0
      %319 = vmatpush.msra.mxu0 0.0
      %320 = vmatpush.msra.mxu0 0.0
      %321 = vmatpush.msra.mxu0 0.0
      %322 = vmatpush.msra.mxu0 0.0
      %323 = vmatpush.msra.mxu0 %v283
      %324 = vmatpush.msra.mxu0 %v282
      %325 = vmatmul.f32.gmra.mxu0 %v286
      %v326 = vpop.f32.mrf.mxu0
      %v327 = vadd.f32 0.0, %v326
      %328 = vmatmul.f32.gmra.mxu0 %v289
      %v329 = vpop.f32.mrf.mxu0
      %v330 = vadd.f32 0.0, %v329
      %331 = vmatmul.f32.gmra.mxu0 %v292
      %v332 = vpop.f32.mrf.mxu0
      %v333 = vadd.f32 0.0, %v332
      %334 = vmatmul.f32.gmra.mxu0 %v295
      %v335 = vpop.f32.mrf.mxu0
      %v336 = vadd.f32 0.0, %v335
      %337 = vmatmul.f32.gmra.mxu0 %v298
      %v338 = vpop.f32.mrf.mxu0
      %v339 = vadd.f32 0.0, %v338
      %340 = vmatmul.f32.gmra.mxu0 %v301
      %v341 = vpop.f32.mrf.mxu0
      %v342 = vadd.f32 0.0, %v341
      %343 = vmatmul.f32.gmra.mxu0 %v304
      %v344 = vpop.f32.mrf.mxu0
      %v345 = vadd.f32 0.0, %v344
      %346 = vmatmul.f32.gmra.mxu0 %v307
      %v347 = vpop.f32.mrf.mxu0
      %v348 = vadd.f32 0.0, %v347
      %349 = vdwg.mxu0
      %v351 = vsel %vm284, %v263, 0
      %v354 = vsel %vm284, %v264, 0
      %v357 = vsel %vm284, %v265, 0
      %v360 = vsel %vm284, %v266, 0
      %v363 = vsel %vm284, %v267, 0
      %v366 = vsel %vm284, %v268, 0
      %v369 = vsel %vm284, %v269, 0
      %v372 = vsel %vm284, %v270, 0
      %374 = vmatpush.msra.mxu0 0.0
      %375 = vmatpush.msra.mxu0 0.0
      %376 = vmatpush.msra.mxu0 0.0
      %377 = vmatpush.msra.mxu0 0.0
      %378 = vmatpush.msra.mxu0 0.0
      %379 = vmatpush.msra.mxu0 0.0
      %380 = vmatpush.msra.mxu0 0.0
      %381 = vmatpush.msra.mxu0 0.0
      %382 = vmatpush.msra.mxu0 0.0
      %383 = vmatpush.msra.mxu0 0.0
      %384 = vmatpush.msra.mxu0 0.0
      %385 = vmatpush.msra.mxu0 0.0
      %386 = vmatpush.msra.mxu0 0.0
      %387 = vmatpush.msra.mxu0 0.0
      %388 = vmatpush.msra.mxu0 %v272
      %389 = vmatpush.msra.mxu0 %v271
      %390 = vmatmul.f32.gmra.mxu0 %v351
      %v391 = vpop.f32.mrf.mxu0
      %v392 = vadd.f32 %v327, %v391
      %393 = vmatmul.f32.gmra.mxu0 %v354
      %v394 = vpop.f32.mrf.mxu0
      %v395 = vadd.f32 %v330, %v394
      %396 = vmatmul.f32.gmra.mxu0 %v357
      %v397 = vpop.f32.mrf.mxu0
      %v398 = vadd.f32 %v333, %v397
      %399 = vmatmul.f32.gmra.mxu0 %v360
      %v400 = vpop.f32.mrf.mxu0
      %v401 = vadd.f32 %v336, %v400
      %402 = vmatmul.f32.gmra.mxu0 %v363
      %v403 = vpop.f32.mrf.mxu0
      %v404 = vadd.f32 %v339, %v403
      %405 = vmatmul.f32.gmra.mxu0 %v366
      %v406 = vpop.f32.mrf.mxu0
      %v407 = vadd.f32 %v342, %v406
      %408 = vmatmul.f32.gmra.mxu0 %v369
      %v409 = vpop.f32.mrf.mxu0
      %v410 = vadd.f32 %v345, %v409
      %411 = vmatmul.f32.gmra.mxu0 %v372
      %v412 = vpop.f32.mrf.mxu0
      %v413 = vadd.f32 %v348, %v412
      %414 = vdwg.mxu0
      %s415 = scalar_lea.vmem %s253, 16
      %v416 = vld [vmem:[%s415] sm:$0xff]
      %v417 = vld [vmem:[%s415 + $0x10] sm:$0xff]
      %v418 = vld [vmem:[%s415 + $0x20] sm:$0xff]
      %v419 = vld [vmem:[%s415 + $0x30] sm:$0xff]
      %v420 = vld [vmem:[%s415 + $0x40] sm:$0xff]
      %v421 = vld [vmem:[%s415 + $0x50] sm:$0xff]
      %v422 = vld [vmem:[%s415 + $0x60] sm:$0xff]
      %v423 = vld [vmem:[%s415 + $0x70] sm:$0xff]
      %s424 = scalar_lea.vmem %s1, 32
      %v425 = vld [vmem:[%s424] sm:$0xff]
      %v426 = vld [vmem:[%s424 + $0x8] sm:$0xff]
      %v428 = vsel %vm284, %v416, 0
      %v431 = vsel %vm284, %v417, 0
      %v434 = vsel %vm284, %v418, 0
      %v437 = vsel %vm284, %v419, 0
      %v440 = vsel %vm284, %v420, 0
      %v443 = vsel %vm284, %v421, 0
      %v446 = vsel %vm284, %v422, 0
      %v449 = vsel %vm284, %v423, 0
      %451 = vmatpush.msra.mxu0 0.0
      %452 = vmatpush.msra.mxu0 0.0
      %453 = vmatpush.msra.mxu0 0.0
      %454 = vmatpush.msra.mxu0 0.0
      %455 = vmatpush.msra.mxu0 0.0
      %456 = vmatpush.msra.mxu0 0.0
      %457 = vmatpush.msra.mxu0 0.0
      %458 = vmatpush.msra.mxu0 0.0
      %459 = vmatpush.msra.mxu0 0.0
      %460 = vmatpush.msra.mxu0 0.0
      %461 = vmatpush.msra.mxu0 0.0
      %462 = vmatpush.msra.mxu0 0.0
      %463 = vmatpush.msra.mxu0 0.0
      %464 = vmatpush.msra.mxu0 0.0
      %465 = vmatpush.msra.mxu0 %v426
      %466 = vmatpush.msra.mxu0 %v425
      %467 = vmatmul.f32.gmra.mxu0 %v428
      %v468 = vpop.f32.mrf.mxu0
      %v469 = vadd.f32 0.0, %v468
      %470 = vmatmul.f32.gmra.mxu0 %v431
      %v471 = vpop.f32.mrf.mxu0
      %v472 = vadd.f32 0.0, %v471
      %473 = vmatmul.f32.gmra.mxu0 %v434
      %v474 = vpop.f32.mrf.mxu0
      %v475 = vadd.f32 0.0, %v474
      %476 = vmatmul.f32.gmra.mxu0 %v437
      %v477 = vpop.f32.mrf.mxu0
      %v478 = vadd.f32 0.0, %v477
      %479 = vmatmul.f32.gmra.mxu0 %v440
      %v480 = vpop.f32.mrf.mxu0
      %v481 = vadd.f32 0.0, %v480
      %482 = vmatmul.f32.gmra.mxu0 %v443
      %v483 = vpop.f32.mrf.mxu0
      %v484 = vadd.f32 0.0, %v483
      %485 = vmatmul.f32.gmra.mxu0 %v446
      %v486 = vpop.f32.mrf.mxu0
      %v487 = vadd.f32 0.0, %v486
      %488 = vmatmul.f32.gmra.mxu0 %v449
      %v489 = vpop.f32.mrf.mxu0
      %v490 = vadd.f32 0.0, %v489
      %491 = vdwg.mxu0
      %v492 = vadd.f32 %v392, %v469
      %v493 = vadd.f32 %v395, %v472
      %v494 = vadd.f32 %v398, %v475
      %v495 = vadd.f32 %v401, %v478
      %v496 = vadd.f32 %v404, %v481
      %v497 = vadd.f32 %v407, %v484
      %v498 = vadd.f32 %v410, %v487
      %v499 = vadd.f32 %v413, %v490
      %v500 = vld [vmem:[%s415 + $0x1] sm:$0xff]
      %v501 = vld [vmem:[%s415 + $0x11] sm:$0xff]
      %v502 = vld [vmem:[%s415 + $0x21] sm:$0xff]
      %v503 = vld [vmem:[%s415 + $0x31] sm:$0xff]
      %v504 = vld [vmem:[%s415 + $0x41] sm:$0xff]
      %v505 = vld [vmem:[%s415 + $0x51] sm:$0xff]
      %v506 = vld [vmem:[%s415 + $0x61] sm:$0xff]
      %v507 = vld [vmem:[%s415 + $0x71] sm:$0xff]
      %s508 = scalar_lea.vmem %s1, 48
      %v509 = vld [vmem:[%s508] sm:$0xff]
      %v510 = vld [vmem:[%s508 + $0x8] sm:$0xff]
      %v512 = vsel %vm284, %v500, 0
      %v515 = vsel %vm284, %v501, 0
      %v518 = vsel %vm284, %v502, 0
      %v521 = vsel %vm284, %v503, 0
      %v524 = vsel %vm284, %v504, 0
      %v527 = vsel %vm284, %v505, 0
      %v530 = vsel %vm284, %v506, 0
      %v533 = vsel %vm284, %v507, 0
      %535 = vmatpush.msra.mxu0 0.0
      %536 = vmatpush.msra.mxu0 0.0
      %537 = vmatpush.msra.mxu0 0.0
      %538 = vmatpush.msra.mxu0 0.0
      %539 = vmatpush.msra.mxu0 0.0
      %540 = vmatpush.msra.mxu0 0.0
      %541 = vmatpush.msra.mxu0 0.0
      %542 = vmatpush.msra.mxu0 0.0
      %543 = vmatpush.msra.mxu0 0.0
      %544 = vmatpush.msra.mxu0 0.0
      %545 = vmatpush.msra.mxu0 0.0
      %546 = vmatpush.msra.mxu0 0.0
      %547 = vmatpush.msra.mxu0 0.0
      %548 = vmatpush.msra.mxu0 0.0
      %549 = vmatpush.msra.mxu0 %v510
      %550 = vmatpush.msra.mxu0 %v509
      %551 = vmatmul.f32.gmra.mxu0 %v512
      %v552 = vpop.f32.mrf.mxu0
      %v553 = vadd.f32 0.0, %v552
      %554 = vmatmul.f32.gmra.mxu0 %v515
      %v555 = vpop.f32.mrf.mxu0
      %v556 = vadd.f32 0.0, %v555
      %557 = vmatmul.f32.gmra.mxu0 %v518
      %v558 = vpop.f32.mrf.mxu0
      %v559 = vadd.f32 0.0, %v558
      %560 = vmatmul.f32.gmra.mxu0 %v521
      %v561 = vpop.f32.mrf.mxu0
      %v562 = vadd.f32 0.0, %v561
      %563 = vmatmul.f32.gmra.mxu0 %v524
      %v564 = vpop.f32.mrf.mxu0
      %v565 = vadd.f32 0.0, %v564
      %566 = vmatmul.f32.gmra.mxu0 %v527
      %v567 = vpop.f32.mrf.mxu0
      %v568 = vadd.f32 0.0, %v567
      %569 = vmatmul.f32.gmra.mxu0 %v530
      %v570 = vpop.f32.mrf.mxu0
      %v571 = vadd.f32 0.0, %v570
      %572 = vmatmul.f32.gmra.mxu0 %v533
      %v573 = vpop.f32.mrf.mxu0
      %v574 = vadd.f32 0.0, %v573
      %575 = vdwg.mxu0
      %v576 = vadd.f32 %v492, %v553
      %v577 = vadd.f32 %v493, %v556
      %v578 = vadd.f32 %v494, %v559
      %v579 = vadd.f32 %v495, %v562
      %v580 = vadd.f32 %v496, %v565
      %v581 = vadd.f32 %v497, %v568
      %v582 = vadd.f32 %v498, %v571
      %v583 = vadd.f32 %v499, %v574
      %v584 = vld [vmem:[%s2] sm:$0x1]
      %v586 = vperm.slane %v584, 0
      %v588 = vadd.f32 %v576, %v586
      %v589 = vadd.f32 %v577, %v586
      %v590 = vadd.f32 %v578, %v586
      %v591 = vadd.f32 %v579, %v586
      %v592 = vadd.f32 %v580, %v586
      %v593 = vadd.f32 %v581, %v586
      %v594 = vadd.f32 %v582, %v586
      %v595 = vadd.f32 %v583, %v586
      %596 = vrot.lane.b32.xlu0 %v273, 4
      %v597 = vpop.permute.xlu0 %596
      %598 = vrot.lane.b32.xlu0 %v274, 4
      %v599 = vpop.permute.xlu0 %598
      %600 = vrot.lane.b32.xlu0 %v275, 4
      %v601 = vpop.permute.xlu0 %600
      %602 = vrot.lane.b32.xlu0 %v276, 4
      %v603 = vpop.permute.xlu0 %602
      %604 = vrot.lane.b32.xlu0 %v277, 4
      %v605 = vpop.permute.xlu0 %604
      %606 = vrot.lane.b32.xlu0 %v278, 4
      %v607 = vpop.permute.xlu0 %606
      %608 = vrot.lane.b32.xlu0 %v279, 4
      %v609 = vpop.permute.xlu0 %608
      %610 = vrot.lane.b32.xlu0 %v280, 4
      %v611 = vpop.permute.xlu0 %610
      %v620 = vmax.f32 %v263, %v597
      %v621 = vmax.f32 %v264, %v599
      %v622 = vmax.f32 %v265, %v601
      %v623 = vmax.f32 %v266, %v603
      %v624 = vmax.f32 %v267, %v605
      %v625 = vmax.f32 %v268, %v607
      %v626 = vmax.f32 %v269, %v609
      %v627 = vmax.f32 %v270, %v611
      %628 = vrot.lane.b32.xlu0 %v500, 4
      %v629 = vpop.permute.xlu0 %628
      %630 = vrot.lane.b32.xlu0 %v501, 4
      %v631 = vpop.permute.xlu0 %630
      %632 = vrot.lane.b32.xlu0 %v502, 4
      %v633 = vpop.permute.xlu0 %632
      %634 = vrot.lane.b32.xlu0 %v503, 4
      %v635 = vpop.permute.xlu0 %634
      %636 = vrot.lane.b32.xlu0 %v504, 4
      %v637 = vpop.permute.xlu0 %636
      %638 = vrot.lane.b32.xlu0 %v505, 4
      %v639 = vpop.permute.xlu0 %638
      %640 = vrot.lane.b32.xlu0 %v506, 4
      %v641 = vpop.permute.xlu0 %640
      %642 = vrot.lane.b32.xlu0 %v507, 4
      %v643 = vpop.permute.xlu0 %642
      %v652 = vmax.f32 %v416, %v629
      %v653 = vmax.f32 %v417, %v631
      %v654 = vmax.f32 %v418, %v633
      %v655 = vmax.f32 %v419, %v635
      %v656 = vmax.f32 %v420, %v637
      %v657 = vmax.f32 %v421, %v639
      %v658 = vmax.f32 %v422, %v641
      %v659 = vmax.f32 %v423, %v643
      %668 = vrot.lane.b32.xlu0 %v652, 8
      %v669 = vpop.permute.xlu0 %668
      %670 = vrot.lane.b32.xlu0 %v653, 8
      %v671 = vpop.permute.xlu0 %670
      %672 = vrot.lane.b32.xlu0 %v654, 8
      %v673 = vpop.permute.xlu0 %672
      %674 = vrot.lane.b32.xlu0 %v655, 8
      %v675 = vpop.permute.xlu0 %674
      %676 = vrot.lane.b32.xlu0 %v656, 8
      %v677 = vpop.permute.xlu0 %676
      %678 = vrot.lane.b32.xlu0 %v657, 8
      %v679 = vpop.permute.xlu0 %678
      %680 = vrot.lane.b32.xlu0 %v658, 8
      %v681 = vpop.permute.xlu0 %680
      %682 = vrot.lane.b32.xlu0 %v659, 8
      %v683 = vpop.permute.xlu0 %682
      %v692 = vmax.f32 %v620, %v669
      %v693 = vmax.f32 %v621, %v671
      %v694 = vmax.f32 %v622, %v673
      %v695 = vmax.f32 %v623, %v675
      %v696 = vmax.f32 %v624, %v677
      %v697 = vmax.f32 %v625, %v679
      %v698 = vmax.f32 %v626, %v681
      %v699 = vmax.f32 %v627, %v683
      %vm700 = vcmask 195584
      %701 = vst.msk [vmem:[#allocation2] sm:$0xff] %vm700, 0.0
      %vm702 = vcmask 189440
      %703 = vst.msk [vmem:[#allocation2 + $0x8] sm:$0x3] %vm702, 0.0
      %s704 = scalar_lea.vmem [#allocation2], 144
      %705 = vst.msk [vmem:[%s704] sm:$0xff] %vm700, 0.0
      %706 = vst.msk [vmem:[%s704 + $0x8] sm:$0x3] %vm702, 0.0
      %s707 = scalar_lea.vmem [#allocation2], 16
      %vm708 = vcmask 57344
      %709 = vst.msk [vmem:[%s707 + $0x1] sm:$0x1] %vm708, 0.0
      %710 = vst.msk [vmem:[%s707 + $0x11] sm:$0x1] %vm708, 0.0
      %711 = vst.msk [vmem:[%s707 + $0x21] sm:$0x1] %vm708, 0.0
      %712 = vst.msk [vmem:[%s707 + $0x31] sm:$0x1] %vm708, 0.0
      %713 = vst.msk [vmem:[%s707 + $0x41] sm:$0x1] %vm708, 0.0
      %714 = vst.msk [vmem:[%s707 + $0x51] sm:$0x1] %vm708, 0.0
      %715 = vst.msk [vmem:[%s707 + $0x61] sm:$0x1] %vm708, 0.0
      %716 = vst.msk [vmem:[%s707 + $0x71] sm:$0x1] %vm708, 0.0
      %vm717 = vcmask 188544
      %718 = vst.msk [vmem:[%s707 + $0x8] sm:$0x1] %vm717, 0.0
      %719 = vst.msk [vmem:[%s707 + $0x18] sm:$0x1] %vm717, 0.0
      %720 = vst.msk [vmem:[%s707 + $0x28] sm:$0x1] %vm717, 0.0
      %721 = vst.msk [vmem:[%s707 + $0x38] sm:$0x1] %vm717, 0.0
      %722 = vst.msk [vmem:[%s707 + $0x48] sm:$0x1] %vm717, 0.0
      %723 = vst.msk [vmem:[%s707 + $0x58] sm:$0x1] %vm717, 0.0
      %724 = vst.msk [vmem:[%s707 + $0x68] sm:$0x1] %vm717, 0.0
      %725 = vst.msk [vmem:[%s707 + $0x78] sm:$0x1] %vm717, 0.0
      %vm726 = vcmask 31744
      %727 = vst.msk [vmem:[%s707 + $0x2] sm:$0xff] %vm726, %v588
      %728 = vst.msk [vmem:[%s707 + $0x12] sm:$0xff] %vm726, %v589
      %729 = vst.msk [vmem:[%s707 + $0x22] sm:$0xff] %vm726, %v590
      %730 = vst.msk [vmem:[%s707 + $0x32] sm:$0xff] %vm726, %v591
      %731 = vst.msk [vmem:[%s707 + $0x42] sm:$0xff] %vm726, %v592
      %732 = vst.msk [vmem:[%s707 + $0x52] sm:$0xff] %vm726, %v593
      %733 = vst.msk [vmem:[%s707 + $0x62] sm:$0xff] %vm726, %v594
      %734 = vst.msk [vmem:[%s707 + $0x72] sm:$0xff] %vm726, %v595
      %743 = vrot.lane.b32.xlu0 %v692, 120
      %v744 = vpop.permute.xlu0 %743
      %745 = vrot.lane.b32.xlu0 %v693, 120
      %v746 = vpop.permute.xlu0 %745
      %747 = vrot.lane.b32.xlu0 %v694, 120
      %v748 = vpop.permute.xlu0 %747
      %749 = vrot.lane.b32.xlu0 %v695, 120
      %v750 = vpop.permute.xlu0 %749
      %751 = vrot.lane.b32.xlu0 %v696, 120
      %v752 = vpop.permute.xlu0 %751
      %753 = vrot.lane.b32.xlu0 %v697, 120
      %v754 = vpop.permute.xlu0 %753
      %755 = vrot.lane.b32.xlu0 %v698, 120
      %v756 = vpop.permute.xlu0 %755
      %757 = vrot.lane.b32.xlu0 %v699, 120
      %v758 = vpop.permute.xlu0 %757
      %vm767 = vcmask 64544
      %768 = vst.msk [vmem:[%s707 + $0x2] sm:$0xff] %vm767, %v744
      %769 = vst.msk [vmem:[%s707 + $0x12] sm:$0xff] %vm767, %v746
      %770 = vst.msk [vmem:[%s707 + $0x22] sm:$0xff] %vm767, %v748
      %771 = vst.msk [vmem:[%s707 + $0x32] sm:$0xff] %vm767, %v750
      %772 = vst.msk [vmem:[%s707 + $0x42] sm:$0xff] %vm767, %v752
      %773 = vst.msk [vmem:[%s707 + $0x52] sm:$0xff] %vm767, %v754
      %774 = vst.msk [vmem:[%s707 + $0x62] sm:$0xff] %vm767, %v756
      %775 = vst.msk [vmem:[%s707 + $0x72] sm:$0xff] %vm767, %v758
      %784 = vrot.lane.b32.xlu0 %v588, 8
      %v785 = vpop.permute.xlu0 %784
      %786 = vrot.lane.b32.xlu0 %v589, 8
      %v787 = vpop.permute.xlu0 %786
      %788 = vrot.lane.b32.xlu0 %v590, 8
      %v789 = vpop.permute.xlu0 %788
      %790 = vrot.lane.b32.xlu0 %v591, 8
      %v791 = vpop.permute.xlu0 %790
      %792 = vrot.lane.b32.xlu0 %v592, 8
      %v793 = vpop.permute.xlu0 %792
      %794 = vrot.lane.b32.xlu0 %v593, 8
      %v795 = vpop.permute.xlu0 %794
      %796 = vrot.lane.b32.xlu0 %v594, 8
      %v797 = vpop.permute.xlu0 %796
      %798 = vrot.lane.b32.xlu0 %v595, 8
      %v799 = vpop.permute.xlu0 %798
      %vm808 = vcmask 97344
      %809 = vst.msk [vmem:[%s707 + $0x1] sm:$0xff] %vm808, %v785
      %810 = vst.msk [vmem:[%s707 + $0x11] sm:$0xff] %vm808, %v787
      %811 = vst.msk [vmem:[%s707 + $0x21] sm:$0xff] %vm808, %v789
      %812 = vst.msk [vmem:[%s707 + $0x31] sm:$0xff] %vm808, %v791
      %813 = vst.msk [vmem:[%s707 + $0x41] sm:$0xff] %vm808, %v793
      %814 = vst.msk [vmem:[%s707 + $0x51] sm:$0xff] %vm808, %v795
      %815 = vst.msk [vmem:[%s707 + $0x61] sm:$0xff] %vm808, %v797
      %816 = vst.msk [vmem:[%s707 + $0x71] sm:$0xff] %vm808, %v799
      %vm817 = vcmask 130144
      %818 = vst.msk [vmem:[%s707 + $0x1] sm:$0xff] %vm817, %v692
      %819 = vst.msk [vmem:[%s707 + $0x11] sm:$0xff] %vm817, %v693
      %820 = vst.msk [vmem:[%s707 + $0x21] sm:$0xff] %vm817, %v694
      %821 = vst.msk [vmem:[%s707 + $0x31] sm:$0xff] %vm817, %v695
      %822 = vst.msk [vmem:[%s707 + $0x41] sm:$0xff] %vm817, %v696
      %823 = vst.msk [vmem:[%s707 + $0x51] sm:$0xff] %vm817, %v697
      %824 = vst.msk [vmem:[%s707 + $0x61] sm:$0xff] %vm817, %v698
      %825 = vst.msk [vmem:[%s707 + $0x71] sm:$0xff] %vm817, %v699
      %826 = vrot.lane.b32.xlu0 %v588, 16
      %v827 = vpop.permute.xlu0 %826
      %828 = vrot.lane.b32.xlu0 %v589, 16
      %v829 = vpop.permute.xlu0 %828
      %830 = vrot.lane.b32.xlu0 %v590, 16
      %v831 = vpop.permute.xlu0 %830
      %832 = vrot.lane.b32.xlu0 %v591, 16
      %v833 = vpop.permute.xlu0 %832
      %834 = vrot.lane.b32.xlu0 %v592, 16
      %v835 = vpop.permute.xlu0 %834
      %836 = vrot.lane.b32.xlu0 %v593, 16
      %v837 = vpop.permute.xlu0 %836
      %838 = vrot.lane.b32.xlu0 %v594, 16
      %v839 = vpop.permute.xlu0 %838
      %840 = vrot.lane.b32.xlu0 %v595, 16
      %v841 = vpop.permute.xlu0 %840
      %vm850 = vcmask 162944
      %851 = vst.msk [vmem:[%s707] sm:$0xff] %vm850, %v827
      %852 = vst.msk [vmem:[%s707 + $0x10] sm:$0xff] %vm850, %v829
      %853 = vst.msk [vmem:[%s707 + $0x20] sm:$0xff] %vm850, %v831
      %854 = vst.msk [vmem:[%s707 + $0x30] sm:$0xff] %vm850, %v833
      %855 = vst.msk [vmem:[%s707 + $0x40] sm:$0xff] %vm850, %v835
      %856 = vst.msk [vmem:[%s707 + $0x50] sm:$0xff] %vm850, %v837
      %857 = vst.msk [vmem:[%s707 + $0x60] sm:$0xff] %vm850, %v839
      %858 = vst.msk [vmem:[%s707 + $0x70] sm:$0xff] %vm850, %v841
      %859 = vrot.lane.b32.xlu0 %v692, 8
      %v860 = vpop.permute.xlu0 %859
      %861 = vrot.lane.b32.xlu0 %v693, 8
      %v862 = vpop.permute.xlu0 %861
      %863 = vrot.lane.b32.xlu0 %v694, 8
      %v864 = vpop.permute.xlu0 %863
      %865 = vrot.lane.b32.xlu0 %v695, 8
      %v866 = vpop.permute.xlu0 %865
      %867 = vrot.lane.b32.xlu0 %v696, 8
      %v868 = vpop.permute.xlu0 %867
      %869 = vrot.lane.b32.xlu0 %v697, 8
      %v870 = vpop.permute.xlu0 %869
      %871 = vrot.lane.b32.xlu0 %v698, 8
      %v872 = vpop.permute.xlu0 %871
      %873 = vrot.lane.b32.xlu0 %v699, 8
      %v874 = vpop.permute.xlu0 %873
      %vm883 = vcmask 195744
      %884 = vst.msk [vmem:[%s707] sm:$0xff] %vm883, %v860
      %885 = vst.msk [vmem:[%s707 + $0x10] sm:$0xff] %vm883, %v862
      %886 = vst.msk [vmem:[%s707 + $0x20] sm:$0xff] %vm883, %v864
      %887 = vst.msk [vmem:[%s707 + $0x30] sm:$0xff] %vm883, %v866
      %888 = vst.msk [vmem:[%s707 + $0x40] sm:$0xff] %vm883, %v868
      %889 = vst.msk [vmem:[%s707 + $0x50] sm:$0xff] %vm883, %v870
      %890 = vst.msk [vmem:[%s707 + $0x60] sm:$0xff] %vm883, %v872
      %891 = vst.msk [vmem:[%s707 + $0x70] sm:$0xff] %vm883, %v874
      %v892 = vld [vmem:[#allocation2 + $0x1] sm:$0xff]
      %v893 = vld [vmem:[#allocation2 + $0x11] sm:$0xff]
      %v894 = vld [vmem:[#allocation2 + $0x21] sm:$0xff]
      %v895 = vld [vmem:[#allocation2 + $0x31] sm:$0xff]
      %v896 = vld [vmem:[#allocation2 + $0x41] sm:$0xff]
      %v897 = vld [vmem:[#allocation2 + $0x51] sm:$0xff]
      %v898 = vld [vmem:[#allocation2 + $0x61] sm:$0xff]
      %v899 = vld [vmem:[#allocation2 + $0x71] sm:$0xff]
      %v900 = vld [vmem:[%s3] sm:$0xff]
      %v901 = vld [vmem:[%s3 + $0x8] sm:$0xff]
      %v902 = vld [vmem:[%s3 + $0x10] sm:$0xff]
      %v903 = vld [vmem:[%s707 + $0x1] sm:$0xff]
      %v904 = vld [vmem:[%s707 + $0x11] sm:$0xff]
      %v905 = vld [vmem:[%s707 + $0x21] sm:$0xff]
      %v906 = vld [vmem:[%s707 + $0x31] sm:$0xff]
      %v907 = vld [vmem:[%s707 + $0x41] sm:$0xff]
      %v908 = vld [vmem:[%s707 + $0x51] sm:$0xff]
      %v909 = vld [vmem:[%s707 + $0x61] sm:$0xff]
      %v910 = vld [vmem:[%s707 + $0x71] sm:$0xff]
      %s911 = scalar_lea.vmem %s3, 24
      %v912 = vld [vmem:[%s911] sm:$0xff]
      %v913 = vld [vmem:[%s911 + $0x8] sm:$0xff]
      %v914 = vld [vmem:[%s911 + $0x10] sm:$0xff]
      %v916 = vsel %vm700, %v903, 0
      %v919 = vsel %vm700, %v904, 0
      %v922 = vsel %vm700, %v905, 0
      %v925 = vsel %vm700, %v906, 0
      %v928 = vsel %vm700, %v907, 0
      %v931 = vsel %vm700, %v908, 0
      %v934 = vsel %vm700, %v909, 0
      %v937 = vsel %vm700, %v910, 0
      %939 = vmatpush.msra.mxu0 0.0
      %940 = vmatpush.msra.mxu0 0.0
      %941 = vmatpush.msra.mxu0 0.0
      %942 = vmatpush.msra.mxu0 0.0
      %943 = vmatpush.msra.mxu0 0.0
      %944 = vmatpush.msra.mxu0 0.0
      %945 = vmatpush.msra.mxu0 0.0
      %946 = vmatpush.msra.mxu0 0.0
      %947 = vmatpush.msra.mxu0 0.0
      %948 = vmatpush.msra.mxu0 0.0
      %949 = vmatpush.msra.mxu0 0.0
      %950 = vmatpush.msra.mxu0 0.0
      %951 = vmatpush.msra.mxu0 0.0
      %952 = vmatpush.msra.mxu0 %v914
      %953 = vmatpush.msra.mxu0 %v913
      %954 = vmatpush.msra.mxu0 %v912
      %955 = vmatmul.f32.gmra.mxu0 %v916
      %v956 = vpop.f32.mrf.mxu0
      %v957 = vadd.f32 0.0, %v956
      %958 = vmatmul.f32.gmra.mxu0 %v919
      %v959 = vpop.f32.mrf.mxu0
      %v960 = vadd.f32 0.0, %v959
      %961 = vmatmul.f32.gmra.mxu0 %v922
      %v962 = vpop.f32.mrf.mxu0
      %v963 = vadd.f32 0.0, %v962
      %964 = vmatmul.f32.gmra.mxu0 %v925
      %v965 = vpop.f32.mrf.mxu0
      %v966 = vadd.f32 0.0, %v965
      %967 = vmatmul.f32.gmra.mxu0 %v928
      %v968 = vpop.f32.mrf.mxu0
      %v969 = vadd.f32 0.0, %v968
      %970 = vmatmul.f32.gmra.mxu0 %v931
      %v971 = vpop.f32.mrf.mxu0
      %v972 = vadd.f32 0.0, %v971
      %973 = vmatmul.f32.gmra.mxu0 %v934
      %v974 = vpop.f32.mrf.mxu0
      %v975 = vadd.f32 0.0, %v974
      %976 = vmatmul.f32.gmra.mxu0 %v937
      %v977 = vpop.f32.mrf.mxu0
      %v978 = vadd.f32 0.0, %v977
      %979 = vdwg.mxu0
      %v981 = vsel %vm700, %v892, 0
      %v984 = vsel %vm700, %v893, 0
      %v987 = vsel %vm700, %v894, 0
      %v990 = vsel %vm700, %v895, 0
      %v993 = vsel %vm700, %v896, 0
      %v996 = vsel %vm700, %v897, 0
      %v999 = vsel %vm700, %v898, 0
      %v1002 = vsel %vm700, %v899, 0
      %1004 = vmatpush.msra.mxu0 0.0
      %1005 = vmatpush.msra.mxu0 0.0
      %1006 = vmatpush.msra.mxu0 0.0
      %1007 = vmatpush.msra.mxu0 0.0
      %1008 = vmatpush.msra.mxu0 0.0
      %1009 = vmatpush.msra.mxu0 0.0
      %1010 = vmatpush.msra.mxu0 0.0
      %1011 = vmatpush.msra.mxu0 0.0
      %1012 = vmatpush.msra.mxu0 0.0
      %1013 = vmatpush.msra.mxu0 0.0
      %1014 = vmatpush.msra.mxu0 0.0
      %1015 = vmatpush.msra.mxu0 0.0
      %1016 = vmatpush.msra.mxu0 0.0
      %1017 = vmatpush.msra.mxu0 %v902
      %1018 = vmatpush.msra.mxu0 %v901
      %1019 = vmatpush.msra.mxu0 %v900
      %1020 = vmatmul.f32.gmra.mxu0 %v981
      %v1021 = vpop.f32.mrf.mxu0
      %v1022 = vadd.f32 %v957, %v1021
      %1023 = vmatmul.f32.gmra.mxu0 %v984
      %v1024 = vpop.f32.mrf.mxu0
      %v1025 = vadd.f32 %v960, %v1024
      %1026 = vmatmul.f32.gmra.mxu0 %v987
      %v1027 = vpop.f32.mrf.mxu0
      %v1028 = vadd.f32 %v963, %v1027
      %1029 = vmatmul.f32.gmra.mxu0 %v990
      %v1030 = vpop.f32.mrf.mxu0
      %v1031 = vadd.f32 %v966, %v1030
      %1032 = vmatmul.f32.gmra.mxu0 %v993
      %v1033 = vpop.f32.mrf.mxu0
      %v1034 = vadd.f32 %v969, %v1033
      %1035 = vmatmul.f32.gmra.mxu0 %v996
      %v1036 = vpop.f32.mrf.mxu0
      %v1037 = vadd.f32 %v972, %v1036
      %1038 = vmatmul.f32.gmra.mxu0 %v999
      %v1039 = vpop.f32.mrf.mxu0
      %v1040 = vadd.f32 %v975, %v1039
      %1041 = vmatmul.f32.gmra.mxu0 %v1002
      %v1042 = vpop.f32.mrf.mxu0
      %v1043 = vadd.f32 %v978, %v1042
      %1044 = vdwg.mxu0
      %s1045 = scalar_lea.vmem [#allocation2], 32
      %v1046 = vld [vmem:[%s1045 + $0x1] sm:$0xff]
      %v1047 = vld [vmem:[%s1045 + $0x11] sm:$0xff]
      %v1048 = vld [vmem:[%s1045 + $0x21] sm:$0xff]
      %v1049 = vld [vmem:[%s1045 + $0x31] sm:$0xff]
      %v1050 = vld [vmem:[%s1045 + $0x41] sm:$0xff]
      %v1051 = vld [vmem:[%s1045 + $0x51] sm:$0xff]
      %v1052 = vld [vmem:[%s1045 + $0x61] sm:$0xff]
      %v1053 = vld [vmem:[%s1045 + $0x71] sm:$0xff]
      %s1054 = scalar_lea.vmem %s3, 48
      %v1055 = vld [vmem:[%s1054] sm:$0xff]
      %v1056 = vld [vmem:[%s1054 + $0x8] sm:$0xff]
      %v1057 = vld [vmem:[%s1054 + $0x10] sm:$0xff]
      %v1059 = vsel %vm700, %v1046, 0
      %v1062 = vsel %vm700, %v1047, 0
      %v1065 = vsel %vm700, %v1048, 0
      %v1068 = vsel %vm700, %v1049, 0
      %v1071 = vsel %vm700, %v1050, 0
      %v1074 = vsel %vm700, %v1051, 0
      %v1077 = vsel %vm700, %v1052, 0
      %v1080 = vsel %vm700, %v1053, 0
      %1082 = vmatpush.msra.mxu0 0.0
      %1083 = vmatpush.msra.mxu0 0.0
      %1084 = vmatpush.msra.mxu0 0.0
      %1085 = vmatpush.msra.mxu0 0.0
      %1086 = vmatpush.msra.mxu0 0.0
      %1087 = vmatpush.msra.mxu0 0.0
      %1088 = vmatpush.msra.mxu0 0.0
      %1089 = vmatpush.msra.mxu0 0.0
      %1090 = vmatpush.msra.mxu0 0.0
      %1091 = vmatpush.msra.mxu0 0.0
      %1092 = vmatpush.msra.mxu0 0.0
      %1093 = vmatpush.msra.mxu0 0.0
      %1094 = vmatpush.msra.mxu0 0.0
      %1095 = vmatpush.msra.mxu0 %v1057
      %1096 = vmatpush.msra.mxu0 %v1056
      %1097 = vmatpush.msra.mxu0 %v1055
      %1098 = vmatmul.f32.gmra.mxu0 %v1059
      %v1099 = vpop.f32.mrf.mxu0
      %v1100 = vadd.f32 0.0, %v1099
      %1101 = vmatmul.f32.gmra.mxu0 %v1062
      %v1102 = vpop.f32.mrf.mxu0
      %v1103 = vadd.f32 0.0, %v1102
      %1104 = vmatmul.f32.gmra.mxu0 %v1065
      %v1105 = vpop.f32.mrf.mxu0
      %v1106 = vadd.f32 0.0, %v1105
      %1107 = vmatmul.f32.gmra.mxu0 %v1068
      %v1108 = vpop.f32.mrf.mxu0
      %v1109 = vadd.f32 0.0, %v1108
      %1110 = vmatmul.f32.gmra.mxu0 %v1071
      %v1111 = vpop.f32.mrf.mxu0
      %v1112 = vadd.f32 0.0, %v1111
      %1113 = vmatmul.f32.gmra.mxu0 %v1074
      %v1114 = vpop.f32.mrf.mxu0
      %v1115 = vadd.f32 0.0, %v1114
      %1116 = vmatmul.f32.gmra.mxu0 %v1077
      %v1117 = vpop.f32.mrf.mxu0
      %v1118 = vadd.f32 0.0, %v1117
      %1119 = vmatmul.f32.gmra.mxu0 %v1080
      %v1120 = vpop.f32.mrf.mxu0
      %v1121 = vadd.f32 0.0, %v1120
      %1122 = vdwg.mxu0
      %v1123 = vadd.f32 %v1022, %v1100
      %v1124 = vadd.f32 %v1025, %v1103
      %v1125 = vadd.f32 %v1028, %v1106
      %v1126 = vadd.f32 %v1031, %v1109
      %v1127 = vadd.f32 %v1034, %v1112
      %v1128 = vadd.f32 %v1037, %v1115
      %v1129 = vadd.f32 %v1040, %v1118
      %v1130 = vadd.f32 %v1043, %v1121
      %v1131 = vld [vmem:[%s4] sm:$0x1]
      %v1133 = vperm.slane %v1131, 0
      %v1135 = vadd.f32 %v1123, %v1133
      %v1136 = vadd.f32 %v1124, %v1133
      %v1137 = vadd.f32 %v1125, %v1133
      %v1138 = vadd.f32 %v1126, %v1133
      %v1139 = vadd.f32 %v1127, %v1133
      %v1140 = vadd.f32 %v1128, %v1133
      %v1141 = vadd.f32 %v1129, %v1133
      %v1142 = vadd.f32 %v1130, %v1133
      %vm1143 = vcmask 64512
      %1144 = vst.msk [vmem:[%s258] sm:$0xff] %vm1143, %v1135
      %1145 = vst.msk [vmem:[%s258 + $0x8] sm:$0xff] %vm1143, %v1136
      %1146 = vst.msk [vmem:[%s258 + $0x10] sm:$0xff] %vm1143, %v1137
      %1147 = vst.msk [vmem:[%s258 + $0x18] sm:$0xff] %vm1143, %v1138
      %1148 = vst.msk [vmem:[%s258 + $0x20] sm:$0xff] %vm1143, %v1139
      %1149 = vst.msk [vmem:[%s258 + $0x28] sm:$0xff] %vm1143, %v1140
      %1150 = vst.msk [vmem:[%s258 + $0x30] sm:$0xff] %vm1143, %v1141
      %1151 = vst.msk [vmem:[%s258 + $0x38] sm:$0xff] %vm1143, %v1142
      %v1152 = vsel %vm1143, %v1135, 0.0
      %v1153 = vsel %vm1143, %v1136, 0.0
      %v1154 = vadd.f32 %v1152, %v1153
      %v1155 = vsel %vm1143, %v1137, 0.0
      %v1156 = vadd.f32 %v1154, %v1155
      %v1157 = vsel %vm1143, %v1138, 0.0
      %v1158 = vadd.f32 %v1156, %v1157
      %v1159 = vsel %vm1143, %v1139, 0.0
      %v1160 = vadd.f32 %v1158, %v1159
      %v1161 = vsel %vm1143, %v1140, 0.0
      %v1162 = vadd.f32 %v1160, %v1161
      %v1163 = vsel %vm1143, %v1141, 0.0
      %v1164 = vadd.f32 %v1162, %v1163
      %v1165 = vsel %vm1143, %v1142, 0.0
      %v1166 = vadd.f32 %v1164, %v1165
      %v1167 = vrot.slane %v1166, 4
      %v1168 = vadd.f32 %v1166, %v1167
      %v1169 = vrot.slane %v1168, 2
      %v1170 = vadd.f32 %v1168, %v1169
      %v1171 = vrot.slane %v1170, 1
      %v1172 = vadd.f32 %v1170, %v1171
      %v1173 = vmul.f32 %v1172, 0.015625
      %v1174 = vsub.f32 %v1135, %v1173
      %v1175 = vsub.f32 %v1136, %v1173
      %v1176 = vsub.f32 %v1137, %v1173
      %v1177 = vsub.f32 %v1138, %v1173
      %v1178 = vsub.f32 %v1139, %v1173
      %v1179 = vsub.f32 %v1140, %v1173
      %v1180 = vsub.f32 %v1141, %v1173
      %v1181 = vsub.f32 %v1142, %v1173
      %1182 = vst.msk [vmem:[%s262] sm:$0x1] %vm708, %v1173
      %v1183 = vmul.f32 %v1174, %v1174
      %v1184 = vmul.f32 %v1175, %v1175
      %v1185 = vmul.f32 %v1176, %v1176
      %v1186 = vmul.f32 %v1177, %v1177
      %v1187 = vmul.f32 %v1178, %v1178
      %v1188 = vmul.f32 %v1179, %v1179
      %v1189 = vmul.f32 %v1180, %v1180
      %v1190 = vmul.f32 %v1181, %v1181
      %v1191 = vsel %vm1143, %v1183, 0.0
      %v1192 = vsel %vm1143, %v1184, 0.0
      %v1193 = vadd.f32 %v1191, %v1192
      %v1194 = vsel %vm1143, %v1185, 0.0
      %v1195 = vadd.f32 %v1193, %v1194
      %v1196 = vsel %vm1143, %v1186, 0.0
      %v1197 = vadd.f32 %v1195, %v1196
      %v1198 = vsel %vm1143, %v1187, 0.0
      %v1199 = vadd.f32 %v1197, %v1198
      %v1200 = vsel %vm1143, %v1188, 0.0
      %v1201 = vadd.f32 %v1199, %v1200
      %v1202 = vsel %vm1143, %v1189, 0.0
      %v1203 = vadd.f32 %v1201, %v1202
      %v1204 = vsel %vm1143, %v1190, 0.0
      %v1205 = vadd.f32 %v1203, %v1204
      %v1206 = vrot.slane %v1205, 4
      %v1207 = vadd.f32 %v1205, %v1206
      %v1208 = vrot.slane %v1207, 2
      %v1209 = vadd.f32 %v1207, %v1208
      %v1210 = vrot.slane %v1209, 1
      %v1211 = vadd.f32 %v1209, %v1210
      %1212 = vst.msk [vmem:[%s262 + $0x1] sm:$0x1] %vm708, %v1211
      %p1213 = scmp.lt.s32.totalorder %s18, 1
      %s1214 = scalar_select %p1213, %s18, 1
      %s1215 = smul.addr %s1214, 8
      %s1216 = smul.addr %s1215, 8
      %s1217 = scalar_lea.vmem %s5, %s1216
      %p1218 = scmp.lt.s32.totalorder %s18, 1
      %s1219 = scalar_select %p1218, %s18, 1
      %s1220 = smul.addr %s1219, 2
      %s1221 = scalar_lea.vmem %s6, %s1220
      // Predicated region
      $region41: #{transition_block.2} parent=39 // pred_check
        %p1222 = pneg %p146
      $region42: #{transition_block.2} parent=39 // pred_check_branch
        %1224 = sbr.rel (%p1222) target = $region44
      $region43: #{transition_block.2} parent=39 // pred_region
        _
      $region44: #{transition_block.2} parent=39 // pred_fallthru
        _
      // Predicated region
      $region45: #{transition_block.2} parent=39 // pred_check
        %p1225 = pneg %p172
      $region46: #{transition_block.2} parent=39 // pred_check_branch
        %1227 = sbr.rel (%p1225) target = $region48
      $region47: #{transition_block.2} parent=39 // pred_region
        _
      $region48: #{transition_block.2} parent=39 // pred_fallthru
        _
    $region40: #{transition_block.2} parent=5 // pred_fallthru
      _
    %p1228 = scmp.le.s32.totalorder 2, %s13
    // Predicated region
    $region49: #{transition_block.2} parent=5 // pred_check
      %p1229 = pneg %p1228
    $region50: #{transition_block.2} parent=5 // pred_check_branch
      %1231 = sbr.rel (%p1229) target = $region52
    $region51: #{transition_block.2} parent=5 // pred_region
      %s1232 = ssub.s32 %s13, 2
      // Predicated region
      $region53: #{transition_block.2} parent=51 // pred_check
        %p1233 = pneg %p152
      $region54: #{transition_block.2} parent=51 // pred_check_branch
        %1235 = sbr.rel (%p1233) target = $region56
      $region55: #{transition_block.2} parent=51 // pred_region
        %p1236 = scmp.lt.s32.totalorder %s19, 1
        %s1237 = scalar_select %p1236, %s19, 1
        %s1238 = smul.addr %s1237, 8
        %s1239 = smul.addr %s1238, 8
        %s1240 = scalar_lea.vmem %s5, %s1239
      $region56: #{transition_block.2} parent=51 // pred_fallthru
        _
      // Predicated region
      $region57: #{transition_block.2} parent=51 // pred_check
        %p1241 = pneg %p178
      $region58: #{transition_block.2} parent=51 // pred_check_branch
        %1243 = sbr.rel (%p1241) target = $region60
      $region59: #{transition_block.2} parent=51 // pred_region
        %p1244 = scmp.lt.s32.totalorder %s19, 1
        %s1245 = scalar_select %p1244, %s19, 1
        %s1246 = smul.addr %s1245, 2
        %s1247 = scalar_lea.vmem %s6, %s1246
      $region60: #{transition_block.2} parent=51 // pred_fallthru
        _
    $region52: #{transition_block.2} parent=5 // pred_fallthru
      _
  $region6: #{transition_block.2} parent=0 // loop_footer
    %s17 = sadd.s32 1, %s13
  $region7: #{transition_block.2} parent=0 // loop_footer_branch
    %12 = sbr.rel target = $region3
  $region8: #{transition_block.2} parent=0 // loop_exit
    _

</llo_original>
